<compile_context>
chip_gen: v5e
topology: v5e:2x2
jax: 0.10.0
libtpu: 0.0.40
codegen_flags: <defaults>
</compile_context>

<pallas_src>
import functools
import math

import jax
import jax.numpy as jnp
from jax.experimental import pallas as pl
from jax.experimental.pallas import tpu as pltpu


# ----------------------------------------------------------------------------
# helpers
# ----------------------------------------------------------------------------
def _pick_tile(n, cap, align):
    """Largest divisor of n that is <= cap, preferring multiples of `align`
    (then multiples of 8).  Falls back to the full dimension n, which is
    always a legal Pallas block dim.
    NOTE: for prime-ish n this falls back to the full dim; pad inputs if that
    would blow the VMEM budget."""
    if n <= cap:
        return n
    for a in (align, 8):
        if a > cap:
            continue
        for t in range(cap - cap % a, 0, -a):
            if n % t == 0:
                return t
    return n


@functools.lru_cache(maxsize=None)
def _vmem_clamp_bytes():
    """Generation-aware scoped-VMEM clamp (leaves headroom for compiler
    internal scratch and double-buffer overlap)."""
    cap = 64 << 20
    try:
        info = pltpu.get_tpu_info()
        cap = int(getattr(info, "vmem_capacity_bytes", cap) or cap)
    except Exception:
        pass
    if cap <= (64 << 20):          # v7x-class: 64 MiB physical per core
        return 48 << 20
    return 100 << 20               # v5e / v6e: 128 MiB physical


def _vmem_limit(block_bytes, extra_bytes=0):
    # double-buffered blocks + scratch/intermediates + headroom, clamped.
    est = 2 * block_bytes + extra_bytes + (8 << 20)
    return int(min(max(est, 16 << 20), _vmem_clamp_bytes()))


# ----------------------------------------------------------------------------
# tiled linear kernel:  y[b] = x[b] @ w_t + b_row     (bf16 MXU, f32 accumulate)
# ----------------------------------------------------------------------------
def _linear_kernel(x_ref, w_ref, b_ref, o_ref):
    # x block: (1, tm, K) bf16; w block: (K, tn) bf16; bias: (1, tn) f32.
    acc = jnp.dot(x_ref[0], w_ref[...], preferred_element_type=jnp.float32)
    o_ref[0] = (acc + b_ref[...]).astype(o_ref.dtype)


def _linear(x, w_t, b_row, *, out_dtype=None, tm_cap=256, tn_cap=512):
    B, S, K = x.shape
    Kw, N = w_t.shape
    assert K == Kw
    out_dtype = out_dtype if out_dtype is not None else x.dtype

    xc = x.astype(jnp.bfloat16)
    wc = w_t.astype(jnp.bfloat16)
    bc = b_row.astype(jnp.float32)

    tm = _pick_tile(S, tm_cap, 8)
    tn = _pick_tile(N, tn_cap, 128)
    out_isz = jnp.dtype(out_dtype).itemsize
    block_bytes = tm * K * 2 + K * tn * 2 + tn * 4 + tm * tn * out_isz
    # TODO(synk): for d_model >= 8192 a K-reduction grid axis (tk, tn) weight
    # blocks would further reduce the per-step weight tile on v7x.

    return pl.pallas_call(
        _linear_kernel,
        out_shape=jax.ShapeDtypeStruct((B, S, N), out_dtype),
        # Weight tile index depends only on the OUTERMOST axis -> it stays
        # resident while the smaller x tiles stream underneath it.
        grid=(N // tn, B, S // tm),
        in_specs=[
            pl.BlockSpec((1, tm, K), lambda j, b, i: (b, i, 0)),
            pl.BlockSpec((K, tn), lambda j, b, i: (0, j)),
            pl.BlockSpec((1, tn), lambda j, b, i: (0, j)),
        ],
        out_specs=pl.BlockSpec((1, tm, tn), lambda j, b, i: (b, i, j)),
        compiler_params=pltpu.CompilerParams(
            dimension_semantics=("parallel", "parallel", "parallel"),
            vmem_limit_bytes=_vmem_limit(block_bytes),
        ),
    )(xc, wc, bc)


# ----------------------------------------------------------------------------
# grouped flash-attention kernel (online softmax, all groups per step)
# ----------------------------------------------------------------------------
def _flash_gqa_kernel(q_ref, k_ref, v_ref, o_ref, m_ref, l_ref, acc_ref,
                      *, n_groups, hpg, hd):
    ki = pl.program_id(2)
    tq = q_ref.shape[1]
    chd = hpg * hd                      # columns per group in q / out

    for g in range(n_groups):
        # Static in-VMEM slices + a small relayout: heads of this group are
        # stacked on the matmul M axis (one MXU call per group per KV tile).
        qg = q_ref[0, :, g * chd:(g + 1) * chd].reshape(hpg * tq, hd)   # bf16
        kg = k_ref[0, :, g * hd:(g + 1) * hd]                           # (tk, hd)
        vg = v_ref[0, :, g * hd:(g + 1) * hd]                           # (tk, hd)

        # Scores for all heads of the group; 1/sqrt(hd) already folded in Wq.
        s = jax.lax.dot_general(qg, kg, (((1,), (1,)), ((), ())),
                                preferred_element_type=jnp.float32)     # (hpg*tq, tk)
        # TODO(synk): optional additive attention mask not implemented (mask=None only).
        m_cur = jnp.max(s, axis=-1, keepdims=True)

        @pl.when(ki == 0)
        def _first():
            p = jnp.exp(s - m_cur)
            m_ref[g] = m_cur
            l_ref[g] = jnp.sum(p, axis=-1, keepdims=True)
            acc_ref[g] = jax.lax.dot_general(
                p.astype(vg.dtype), vg, (((1,), (0,)), ((), ())),
                preferred_element_type=jnp.float32)

        @pl.when(ki > 0)
        def _update():
            m_prev = m_ref[g]
            m_new = jnp.maximum(m_prev, m_cur)
            alpha = jnp.exp(m_prev - m_new)
            p = jnp.exp(s - m_new)
            l_ref[g] = alpha * l_ref[g] + jnp.sum(p, axis=-1, keepdims=True)
            acc_ref[g] = alpha * acc_ref[g] + jax.lax.dot_general(
                p.astype(vg.dtype), vg, (((1,), (0,)), ((), ())),
                preferred_element_type=jnp.float32)
            m_ref[g] = m_new

    @pl.when(ki == pl.num_programs(2) - 1)
    def _finalize():
        for g in range(n_groups):
            inv_l = pl.reciprocal(l_ref[g], approx=True)          # EUP slot
            out = (acc_ref[g] * inv_l).astype(o_ref.dtype)        # (hpg*tq, hd)
            # back to (tq, hpg*hd): natural head order, lane-dense store.
            o_ref[0, :, g * chd:(g + 1) * chd] = out.reshape(tq, chd)


def _flash_gqa(q, k, v, n_heads, n_groups, *, tk_cap=512):
    """q: (B, S, D) pre-scaled; k, v: (B, S, G*hd) -> out (B, S, D) (natural head order)."""
    B, S, D = q.shape
    kv_dim = k.shape[2]
    G = n_groups
    hd = D // n_heads
    hpg = n_heads // G
    assert kv_dim == G * hd

    out_dtype = q.dtype
    qc = q.astype(jnp.bfloat16)
    kc = k.astype(jnp.bfloat16)
    vc = v.astype(jnp.bfloat16)

    # Keep hpg*tq (accumulator rows) and the q/out blocks bounded.
    tq_cap = min(256, max(64, 1024 // max(hpg, 1)), max(64, (4 << 20) // (2 * D)))
    tq = _pick_tile(S, tq_cap, 8)
    tk = _pick_tile(S, tk_cap, 128)     # lane-dense score / exp / PV-K dim

    out_isz = jnp.dtype(out_dtype).itemsize
    block_bytes = tq * D * 2 + 2 * tk * kv_dim * 2 + tq * D * out_isz
    stat_bytes = 2 * G * hpg * tq * 128 * 4          # m, l (lane-padded)
    acc_bytes = G * hpg * tq * hd * 4
    sp_bytes = 3 * hpg * tq * tk * 4                 # s / p / exp temporaries
    extra = stat_bytes + acc_bytes + sp_bytes

    kernel = functools.partial(_flash_gqa_kernel, n_groups=G, hpg=hpg, hd=hd)
    return pl.pallas_call(
        kernel,
        out_shape=jax.ShapeDtypeStruct((B, S, D), out_dtype),
        grid=(B, S // tq, S // tk),
        in_specs=[
            pl.BlockSpec((1, tq, D), lambda b, qi, ki: (b, qi, 0)),
            pl.BlockSpec((1, tk, kv_dim), lambda b, qi, ki: (b, ki, 0)),
            pl.BlockSpec((1, tk, kv_dim), lambda b, qi, ki: (b, ki, 0)),
        ],
        out_specs=pl.BlockSpec((1, tq, D), lambda b, qi, ki: (b, qi, 0)),
        scratch_shapes=[
            pltpu.VMEM((G, hpg * tq, 1), jnp.float32),    # running max
            pltpu.VMEM((G, hpg * tq, 1), jnp.float32),    # running denominator
            pltpu.VMEM((G, hpg * tq, hd), jnp.float32),   # unnormalized output
        ],
        compiler_params=pltpu.CompilerParams(
            dimension_semantics=("parallel", "parallel", "arbitrary"),
            vmem_limit_bytes=_vmem_limit(block_bytes, extra),
        ),
    )(qc, kc, vc)


# ----------------------------------------------------------------------------
# full forward pass
# ----------------------------------------------------------------------------
def grouped_query_attention(x, params, n_heads, n_groups):
    """params: torch-style (Wq, bq, Wk, bk, Wv, bv, Wo, bo) with W as (out, in)."""
    B, S, D = x.shape
    assert D % n_heads == 0, "d_model must be divisible by n_heads"
    assert n_heads % n_groups == 0, "n_heads must be divisible by n_groups"
    hd = D // n_heads
    hpg = n_heads // n_groups
    G = n_groups
    wq, bq, wk, bk, wv, bv, wo, bo = params

    # Fold 1/sqrt(head_dim) into the Q projection.
    scale = 1.0 / math.sqrt(hd)
    wq_t = (wq * scale).T                      # (D, D)
    bq_s = (bq * scale).reshape(1, -1)
    wk_t, bk2 = wk.T, bk.reshape(1, -1)        # (D, kv_dim)
    wv_t, bv2 = wv.T, bv.reshape(1, -1)

    # Fold the 'b g h n d -> b n (h g d)' output permutation into Wo's rows so
    # the attention output can stay in natural head order (no in-kernel concat,
    # no wrapper transposes).
    nat = jnp.arange(D)
    d_idx = nat % hd
    head = nat // hd                            # natural head index = g*hpg + h
    g_idx = head // hpg
    h_idx = head % hpg
    perm = (h_idx * G + g_idx) * hd + d_idx
    wo_t = wo.T[perm, :]                        # (D, D), row-permuted
    bo2 = bo.reshape(1, -1)

    # 1) projections (tiled bf16 Pallas linear kernels).
    q = _linear(x, wq_t, bq_s, out_dtype=jnp.bfloat16)    # (B, S, D), pre-scaled
    k = _linear(x, wk_t, bk2, out_dtype=jnp.bfloat16)     # (B, S, kv_dim)
    v = _linear(x, wv_t, bv2, out_dtype=jnp.bfloat16)     # (B, S, kv_dim)

    # 2) grouped flash attention straight on the (B, S, *) layouts.
    o = _flash_gqa(q, k, v, n_heads, n_groups)            # (B, S, D) bf16

    # 3) output projection (Wo rows already permuted), back to x.dtype.
    return _linear(o, wo_t, bo2, out_dtype=x.dtype)


# ----------------------------------------------------------------------------
# pure-JAX reference (matches the PyTorch forward, mask=None)
# ----------------------------------------------------------------------------
def gqa_reference(x, params, n_heads, n_groups, mm_dtype=jnp.float32):
    """Reference with the same matmul input dtype as the kernels (f32 accumulate)."""
    wq, bq, wk, bk, wv, bv, wo, bo = params
    B, S, D = x.shape
    hd = D // n_heads
    G = n_groups
    hpg = n_heads // G
    c = lambda a: a.astype(mm_dtype)
    f32 = jnp.float32
    q = jnp.einsum('bsd,ed->bse', c(x), c(wq), preferred_element_type=f32) + bq
    k = jnp.einsum('bsd,ed->bse', c(x), c(wk), preferred_element_type=f32) + bk
    v = jnp.einsum('bsd,ed->bse', c(x), c(wv), preferred_element_type=f32) + bv
    q = q.reshape(B, S, n_heads, hd).transpose(0, 2, 1, 3)
    k = k.reshape(B, S, G, hd).transpose(0, 2, 1, 3)
    v = v.reshape(B, S, G, hd).transpose(0, 2, 1, 3)
    q = q.reshape(B, G, hpg, S, hd)                        # 'b (g h) n d -> b g h n d'
    s = jnp.einsum('bghnd,bgsd->bghns', c(q), c(k),
                   preferred_element_type=f32) / math.sqrt(hd)
    p = jax.nn.softmax(s, axis=-1)
    o = jnp.einsum('bghns,bgsd->bghnd', c(p), c(v), preferred_element_type=f32)
    o = o.transpose(0, 3, 2, 1, 4).reshape(B, S, D)        # 'b g h n d -> b n (h g d)'
    return jnp.einsum('bsd,ed->bse', c(o), c(wo), preferred_element_type=f32) + bo


if __name__ == "__main__":
    # Small but TPU-layout-friendly shapes (head_dim = 128, lane-aligned slices).
    B, S, D = 2, 64, 512
    n_heads, n_groups = 4, 2
    head_dim = D // n_heads           # 128
    kv_dim = head_dim * n_groups      # 256

    key = jax.random.PRNGKey(0)
    keys = jax.random.split(key, 9)
    init = lambda k, shape: jax.random.normal(k, shape, jnp.float32) * 0.05
    wq = init(keys[0], (D, D));        bq = init(keys[1], (D,))
    wk = init(keys[2], (kv_dim, D));   bk = init(keys[3], (kv_dim,))
    wv = init(keys[4], (kv_dim, D));   bv = init(keys[5], (kv_dim,))
    wo = init(keys[6], (D, D));        bo = init(keys[7], (D,))
    x = jax.random.normal(keys[8], (B, S, D), jnp.float32)

    params = (wq, bq, wk, bk, wv, bv, wo, bo)

    out = grouped_query_attention(x, params, n_heads, n_groups)
    out = jax.block_until_ready(out)
    assert out.shape == (B, S, D)
    assert out.dtype == x.dtype

    # Compare against a reference that uses the same bf16 matmul inputs
    # (isolates kernel/flash logic from expected bf16 rounding).
    ref = gqa_reference(x, params, n_heads, n_groups, mm_dtype=jnp.bfloat16)
    max_diff = float(jnp.max(jnp.abs(out - ref)))
    assert jnp.allclose(out, ref, rtol=3e-2, atol=3e-2), \
        f"kernel != reference (max abs diff {max_diff})"

    print("KERNEL_OK")
</pallas_src>

<mosaic_0001>
module attributes {stable_mosaic.version = 11 : i64} {
  func.func @_linear_kernel(%arg0: i32, %arg1: i32, %arg2: i32, %arg3: memref<1x64x512xbf16, #tpu.memory_space<vmem>>, %arg4: memref<512x512xbf16, #tpu.memory_space<vmem>>, %arg5: memref<1x512xf32, #tpu.memory_space<vmem>>, %arg6: memref<1x64x512xbf16, #tpu.memory_space<vmem>>) attributes {dimension_semantics = [#tpu.dimension_semantics<parallel>, #tpu.dimension_semantics<parallel>, #tpu.dimension_semantics<parallel>], iteration_bounds = array<i64: 1, 2, 1>, scalar_prefetch = 0 : i64, scratch_operands = 0 : i64, tpu.core_type = #tpu.core_type<tc>, window_params = [{transform_indices = @transform_0, window_bounds = array<i64: 1, 64, 512>}, {transform_indices = @transform_1, window_bounds = array<i64: 512, 512>}, {transform_indices = @transform_2, window_bounds = array<i64: 1, 512>}, {transform_indices = @transform_3, window_bounds = array<i64: 1, 64, 512>}]} {
    %c0 = arith.constant 0 : index
    %c0_0 = arith.constant 0 : index
    %c0_1 = arith.constant 0 : index
    %0 = vector.load %arg3[%c0, %c0_0, %c0_1] : memref<1x64x512xbf16, #tpu.memory_space<vmem>>, vector<1x64x512xbf16>
    %1 = vector.shape_cast %0 : vector<1x64x512xbf16> to vector<64x512xbf16>
    %c0_2 = arith.constant 0 : index
    %c0_3 = arith.constant 0 : index
    %2 = vector.load %arg4[%c0_2, %c0_3] : memref<512x512xbf16, #tpu.memory_space<vmem>>, vector<512x512xbf16>
    %cst = arith.constant dense<0.000000e+00> : vector<64x512xf32>
    %3 = tpu.matmul %1, %2, %cst {dimension_numbers = #tpu.dot_dimension_numbers<[1], [0], [0], [1], [0, 0, 1, 1], [], []>} : vector<64x512xbf16>, vector<512x512xbf16>, vector<64x512xf32> -> vector<64x512xf32>
    %c0_4 = arith.constant 0 : index
    %c0_5 = arith.constant 0 : index
    %4 = vector.load %arg5[%c0_4, %c0_5] : memref<1x512xf32, #tpu.memory_space<vmem>>, vector<1x512xf32>
    %5 = vector.broadcast %4 : vector<1x512xf32> to vector<64x512xf32>
    %6 = arith.addf %3, %5 : vector<64x512xf32>
    %7 = arith.truncf %6 : vector<64x512xf32> to vector<64x512xbf16>
    %c0_6 = arith.constant 0 : index
    %c0_7 = arith.constant 0 : index
    %c0_8 = arith.constant 0 : index
    %8 = vector.load %arg6[%c0_6, %c0_7, %c0_8] : memref<1x64x512xbf16, #tpu.memory_space<vmem>>, vector<1x64x512xbf16>
    %9 = vector.shape_cast %8 : vector<1x64x512xbf16> to vector<64x512xbf16>
    %10 = vector.shape_cast %7 : vector<64x512xbf16> to vector<1x64x512xbf16>
    tpu.vector_store %arg6[%c0_6, %c0_7, %c0_8], %10 {strides = array<i32>} : memref<1x64x512xbf16, #tpu.memory_space<vmem>>, vector<1x64x512xbf16>,
    return
  }
  func.func @transform_0(%arg0: i32, %arg1: i32, %arg2: i32) -> (i32, i32, i32) {
    %c0_i32 = arith.constant 0 : i32
    %c0_i32_0 = arith.constant 0 : i32
    return %arg1, %arg2, %c0_i32 : i32, i32, i32
  }
  func.func @transform_1(%arg0: i32, %arg1: i32, %arg2: i32) -> (i32, i32) {
    %c0_i32 = arith.constant 0 : i32
    %c0_i32_0 = arith.constant 0 : i32
    return %c0_i32, %arg0 : i32, i32
  }
  func.func @transform_2(%arg0: i32, %arg1: i32, %arg2: i32) -> (i32, i32) {
    %c0_i32 = arith.constant 0 : i32
    %c0_i32_0 = arith.constant 0 : i32
    return %c0_i32, %arg0 : i32, i32
  }
  func.func @transform_3(%arg0: i32, %arg1: i32, %arg2: i32) -> (i32, i32, i32) {
    %c0_i32 = arith.constant 0 : i32
    return %arg1, %arg2, %arg0 : i32, i32, i32
  }
}

</mosaic_0001>

<llo_original>
// kernel: tpu_custom_call.1
$region0: #{tpu_custom_call.1}
  #allocation0 [shape = 'u32[]', space=smem, size = 0x4, offset = 0x4, fixed_abs, tag = 'smem constant byte address 0x4 - core index']
  #allocation1 [shape = 'u32[72,128]{1,0:T(1,128)}', space=vmem, size = 0x9000, scoped, tag = 'internal scratch']
  %s0 = inlined_call_operand.hbm [shape: bf16[2,64,512], index: 0, kind: input, shape index: {}]
  %s1 = inlined_call_operand.hbm [shape: bf16[512,512], index: 1, kind: input, shape index: {}]
  %s2 = inlined_call_operand.hbm [shape: f32[1,512], index: 2, kind: input, shape index: {}]
  %s3 = inlined_call_operand.hbm [shape: bf16[2,64,512], index: 3, kind: output, shape index: {}]
  %s4 = sld [smem:[#allocation0]]
  $region57: #{tpu_custom_call.1} parent=0
    _
  %s6 = ssub.s32 1, %s4
  %s7 = scalar_select 0, %s6, %s4
  $region1: #{tpu_custom_call.1} parent=0
    #allocation2 [shape = 'u8[131072]{0}', space=vmem, size = 0x20000, scoped, tag = 'input window, operand 0']
    #allocation3 [shape = 's32[2]{0}', space=sflag, size = 0x8, scoped, tag = 'scoped memory for tpu_custom_call.1']
    #allocation4 [shape = 's32[2]{0}', space=sflag, size = 0x8, scoped, tag = 'scoped memory for tpu_custom_call.1']
    #allocation5 [shape = 'u8[524288]{0}', space=vmem, size = 0x80000, scoped, tag = 'input window, operand 1, single buffered']
    #allocation6 [shape = 's32[1]{0}', space=sflag, size = 0x4, scoped, tag = 'scoped memory for tpu_custom_call.1']
    #allocation7 [shape = 'u8[2048]{0}', space=vmem, size = 0x800, scoped, tag = 'input window, operand 2, single buffered']
    #allocation8 [shape = 'u8[131072]{0}', space=vmem, size = 0x20000, scoped, tag = 'output window, operand 0']
    %8 = vsyncpa [#allocation3], 0
    %s9 = scalar_lea.sflag [#allocation3], 1
    %10 = vsyncpa %s9, 0
    %11 = vsyncpa [#allocation6], 0
    %12 = vsyncpa [#allocation4], 0
    %s13 = scalar_lea.sflag [#allocation4], 1
    %14 = vsyncpa %s13, 0
    loop: start=0, step=1, limit=4
    $region2: #{tpu_custom_call.1} parent=1 // loop_pre_header
      _
    $region3: #{tpu_custom_call.1} parent=1 // loop_header
      %s16 = sphi 0, %s20
      %p17 = scmp.ge.s32.totalorder %s16, 4
      %s23 = sphi 0, %s42
      %s24 = sphi 0, %s38
      %s25 = sphi 0, %s34
      %s26 = sphi 0, %s23
      %s27 = sphi 0, %s24
      %s28 = sphi 0, %s25
      %s29 = sphi 0, %s26
      %s30 = sphi 0, %s27
      %s31 = sphi 0, %s28
      %s47 = sphi 0, %s49
      %s50 = sphi 0, %s47
      %s51 = sphi 0, %s50
      %s67 = sphi 0, %s51
      %s73 = sphi 0, %s75
      %s76 = sphi 0, %s73
      %s77 = sphi 0, %s76
      %s93 = sphi 0, %s77
      %s99 = sphi 0, %s101
      %s102 = sphi 0, %s99
      %s103 = sphi 0, %s102
      %s119 = sphi 0, %s103
      %s129 = sphi 0, %s131
      %s132 = sphi 0, %s129
      %s133 = sphi 0, %s132
      %s149 = sphi 0, %s133
    $region4: #{tpu_custom_call.1} parent=1 // loop_header_branch
      %19 = sbr.rel (%p17) target = $region8
    $region5: #{tpu_custom_call.1} parent=1 // loop_body
      %s21 = ssub.s32 %s16, 1
      %s22 = ssub.s32 %s16, 2
      %s32 = sadd.s32 1, %s25
      %p33 = scmp.ge.s32.totalorder %s32, 1
      %s34 = scalar_select %p33, 0, %s32
      %s35 = sadd.s32 1, %s24
      %s36 = scalar_select %p33, %s35, %s24
      %p37 = scmp.ge.s32.totalorder %s36, 2
      %s38 = scalar_select %p37, 0, %s36
      %s39 = sadd.s32 1, %s23
      %s40 = scalar_select %p37, %s39, %s23
      %p41 = scmp.ge.s32.totalorder %s40, 1
      %s42 = scalar_select %p41, 0, %s40
      %s43 = ssub.s32 %s24, %s38
      %s44 = ssub.s32 %s25, %s34
      %s45 = sor.u32 %s43, %s44
      %p46 = scmp.eq.s32.totalorder %s45, 0
      %s48 = sadd.s32 %s47, 1
      %s49 = scalar_select %p46, %s47, %s48
      %p52 = pneg %p46
      %p53 = scmp.eq.s32.totalorder %s16, 1
      %p54 = por %p52, %p53
      %p55 = scmp.ne.s32.totalorder %s47, %s50
      %p56 = scmp.eq.s32.totalorder %s16, 0
      %p57 = por %p55, %p56
      %p58 = scmp.ne.s32.totalorder %s47, %s50
      %p59 = scmp.eq.s32.totalorder %s21, 1
      %p60 = por %p58, %p59
      %p61 = scmp.ne.s32.totalorder %s50, %s51
      %p62 = scmp.eq.s32.totalorder %s21, 0
      %p63 = por %p61, %p62
      %p64 = scmp.ne.s32.totalorder %s50, %s51
      %p65 = scmp.eq.s32.totalorder %s22, 1
      %p66 = por %p64, %p65
      %p68 = scmp.ne.s32.totalorder %s51, %s67
      %p69 = scmp.eq.s32.totalorder %s22, 0
      %p70 = por %p68, %p69
      %s71 = ssub.s32 %s23, %s42
      %p72 = scmp.eq.s32.totalorder %s71, 0
      %s74 = sadd.s32 %s73, 1
      %s75 = scalar_select %p72, %s73, %s74
      %p78 = pneg %p72
      %p79 = scmp.eq.s32.totalorder %s16, 1
      %p80 = por %p78, %p79
      %p81 = scmp.ne.s32.totalorder %s73, %s76
      %p82 = scmp.eq.s32.totalorder %s16, 0
      %p83 = por %p81, %p82
      %p84 = scmp.ne.s32.totalorder %s73, %s76
      %p85 = scmp.eq.s32.totalorder %s21, 1
      %p86 = por %p84, %p85
      %p87 = scmp.ne.s32.totalorder %s76, %s77
      %p88 = scmp.eq.s32.totalorder %s21, 0
      %p89 = por %p87, %p88
      %p90 = scmp.ne.s32.totalorder %s76, %s77
      %p91 = scmp.eq.s32.totalorder %s22, 1
      %p92 = por %p90, %p91
      %p94 = scmp.ne.s32.totalorder %s77, %s93
      %p95 = scmp.eq.s32.totalorder %s22, 0
      %p96 = por %p94, %p95
      %s97 = ssub.s32 %s23, %s42
      %p98 = scmp.eq.s32.totalorder %s97, 0
      %s100 = sadd.s32 %s99, 1
      %s101 = scalar_select %p98, %s99, %s100
      %p104 = pneg %p98
      %p105 = scmp.eq.s32.totalorder %s16, 1
      %p106 = por %p104, %p105
      %p107 = scmp.ne.s32.totalorder %s99, %s102
      %p108 = scmp.eq.s32.totalorder %s16, 0
      %p109 = por %p107, %p108
      %p110 = scmp.ne.s32.totalorder %s99, %s102
      %p111 = scmp.eq.s32.totalorder %s21, 1
      %p112 = por %p110, %p111
      %p113 = scmp.ne.s32.totalorder %s102, %s103
      %p114 = scmp.eq.s32.totalorder %s21, 0
      %p115 = por %p113, %p114
      %p116 = scmp.ne.s32.totalorder %s102, %s103
      %p117 = scmp.eq.s32.totalorder %s22, 1
      %p118 = por %p116, %p117
      %p120 = scmp.ne.s32.totalorder %s103, %s119
      %p121 = scmp.eq.s32.totalorder %s22, 0
      %p122 = por %p120, %p121
      %s123 = ssub.s32 %s24, %s38
      %s124 = ssub.s32 %s25, %s34
      %s125 = sor.u32 %s123, %s124
      %s126 = ssub.s32 %s23, %s42
      %s127 = sor.u32 %s125, %s126
      %p128 = scmp.eq.s32.totalorder %s127, 0
      %s130 = sadd.s32 %s129, 1
      %s131 = scalar_select %p128, %s129, %s130
      %p134 = pneg %p128
      %p135 = scmp.eq.s32.totalorder %s16, 1
      %p136 = por %p134, %p135
      %p137 = scmp.ne.s32.totalorder %s129, %s132
      %p138 = scmp.eq.s32.totalorder %s16, 0
      %p139 = por %p137, %p138
      %p140 = scmp.ne.s32.totalorder %s129, %s132
      %p141 = scmp.eq.s32.totalorder %s21, 1
      %p142 = por %p140, %p141
      %p143 = scmp.ne.s32.totalorder %s132, %s133
      %p144 = scmp.eq.s32.totalorder %s21, 0
      %p145 = por %p143, %p144
      %p146 = scmp.ne.s32.totalorder %s132, %s133
      %p147 = scmp.eq.s32.totalorder %s22, 1
      %p148 = por %p146, %p147
      %p150 = scmp.ne.s32.totalorder %s133, %s149
      %p151 = scmp.eq.s32.totalorder %s22, 0
      %p152 = por %p150, %p151
      %p153 = scmp.le.s32.totalorder 1, %s16
      %p154 = scmp.lt.s32.totalorder %s16, 3
      %p155 = pnand %p153, %p154
      %p156 = pneg %p155
      // Predicated region
      $region9: #{tpu_custom_call.1} parent=5 // pred_check
        _
      $region10: #{tpu_custom_call.1} parent=5 // pred_check_branch
        %158 = sbr.rel (%p155) target = $region12
      $region11: #{tpu_custom_call.1} parent=5 // pred_region
        %s159 = ssub.s32 %s16, 1
        // Predicated region
        $region13: #{tpu_custom_call.1} parent=11 // pred_check
          %p160 = pneg %p89
        $region14: #{tpu_custom_call.1} parent=11 // pred_check_branch
          %162 = sbr.rel (%p160) target = $region16
        $region15: #{tpu_custom_call.1} parent=11 // pred_region
          %s163 = smul.u32 4, %s26
          %165 = vsyncadd [#allocation6], 0
          %s166 = smul.addr %s163, 4
          %s167 = scalar_lea.hbm %s1, %s166
          %s168 = sshll.u32 %s167, 4
          %s169 = int_to_ptr.hbm [resolvable:$true] %s168
          %s170 = sshll.u32 [#allocation5], 4
          %s171 = int_to_ptr.vmem [resolvable:$true] %s170
          %176 = dma.hbm_to_vmem [thread:$0]  %s169, 16384, %s171, [#allocation6], 256, 256, 16
        $region16: #{tpu_custom_call.1} parent=11 // pred_fallthru
          _
        // Predicated region
        $region17: #{tpu_custom_call.1} parent=11 // pred_check
          %p177 = pneg %p115
        $region18: #{tpu_custom_call.1} parent=11 // pred_check_branch
          %179 = sbr.rel (%p177) target = $region20
        $region19: #{tpu_custom_call.1} parent=11 // pred_region
          %s180 = smul.u32 4, %s26
          %182 = vsyncadd [#allocation6], 0
          %s183 = scalar_lea.hbm %s2, %s180
          %s185 = sshll.u32 %s183, 4
          %s186 = int_to_ptr.hbm [resolvable:$true] %s185
          %s187 = sshll.u32 [#allocation7], 4
          %s188 = int_to_ptr.vmem [resolvable:$true] %s187
          %190 = dma.hbm_to_vmem [thread:$0]  %s186, 64, %s188, [#allocation6]
        $region20: #{tpu_custom_call.1} parent=11 // pred_fallthru
          _
      $region12: #{tpu_custom_call.1} parent=5 // pred_fallthru
        _
      %p191 = scmp.lt.s32.totalorder %s16, 2
      // Predicated region
      $region21: #{tpu_custom_call.1} parent=5 // pred_check
        %p192 = pneg %p191
      $region22: #{tpu_custom_call.1} parent=5 // pred_check_branch
        %194 = sbr.rel (%p192) target = $region24
      $region23: #{tpu_custom_call.1} parent=5 // pred_region
        // Predicated region
        $region25: #{tpu_custom_call.1} parent=23 // pred_check
          %p195 = pneg %p57
        $region26: #{tpu_custom_call.1} parent=23 // pred_check_branch
          %197 = sbr.rel (%p195) target = $region28
        $region27: #{tpu_custom_call.1} parent=23 // pred_region
          %s198 = sand.u32 %s47, 1
          %s199 = scalar_lea.sflag [#allocation3], %s198
          %s200 = sand.u32 %s47, 1
          %s201 = smul.addr %s200, 128
          %s202 = scalar_lea.vmem [#allocation2], %s201
          %s203 = smul.u32 8, %s25
          %205 = vsyncadd %s199, 0
          %s206 = smul.addr %s203, 4
          %s207 = smul.addr %s24, 32
          %s208 = sadd.s32 %s206, %s207
          %s209 = smul.addr %s208, 4
          %s210 = scalar_lea.hbm %s0, %s209
          %s211 = sshll.u32 %s210, 4
          %s212 = int_to_ptr.hbm [resolvable:$true] %s211
          %s213 = sshll.u32 %s202, 4
          %s214 = int_to_ptr.vmem [resolvable:$true] %s213
          %219 = dma.hbm_to_vmem [thread:$0]  %s212, 2048, %s214, %s199, 256, 256, 16
        $region28: #{tpu_custom_call.1} parent=23 // pred_fallthru
          _
      $region24: #{tpu_custom_call.1} parent=5 // pred_fallthru
        _
      %p220 = scmp.le.s32.totalorder 1, %s16
      %p221 = scmp.lt.s32.totalorder %s16, 3
      %p222 = pnand %p220, %p221
      %p223 = pneg %p222
      // Predicated region
      $region29: #{tpu_custom_call.1} parent=5 // pred_check
        _
      $region30: #{tpu_custom_call.1} parent=5 // pred_check_branch
        %225 = sbr.rel (%p222) target = $region32
      $region31: #{tpu_custom_call.1} parent=5 // pred_region
        %s226 = ssub.s32 %s16, 1
        %s227 = sand.u32 %s50, 1
        %s228 = scalar_lea.sflag [#allocation3], %s227
        %s229 = sand.u32 %s50, 1
        %s230 = smul.addr %s229, 128
        %s231 = scalar_lea.vmem [#allocation2], %s230
        // Predicated region
        $region33: #{tpu_custom_call.1} parent=31 // pred_check
          %p232 = pneg %p63
        $region34: #{tpu_custom_call.1} parent=31 // pred_check_branch
          %234 = sbr.rel (%p232) target = $region36
        $region35: #{tpu_custom_call.1} parent=31 // pred_region
          %236 = dma.done %s228, 2048
        $region36: #{tpu_custom_call.1} parent=31 // pred_fallthru
          _
        // Predicated region
        $region37: #{tpu_custom_call.1} parent=31 // pred_check
          %p237 = pneg %p89
        $region38: #{tpu_custom_call.1} parent=31 // pred_check_branch
          %239 = sbr.rel (%p237) target = $region40
        $region39: #{tpu_custom_call.1} parent=31 // pred_region
          %241 = dma.done [#allocation6], 16384
        $region40: #{tpu_custom_call.1} parent=31 // pred_fallthru
          _
        // Predicated region
        $region41: #{tpu_custom_call.1} parent=31 // pred_check
          %p242 = pneg %p115
        $region42: #{tpu_custom_call.1} parent=31 // pred_check_branch
          %244 = sbr.rel (%p242) target = $region44
        $region43: #{tpu_custom_call.1} parent=31 // pred_region
          %246 = dma.done [#allocation6], 64
        $region44: #{tpu_custom_call.1} parent=31 // pred_fallthru
          _
        %s247 = sand.u32 %s50, 1
        %s248 = scalar_lea.sflag [#allocation3], %s247
        %s249 = sand.u32 %s50, 1
        %s250 = smul.addr %s249, 128
        %s251 = scalar_lea.vmem [#allocation2], %s250
        %p252 = pneg %p63
        %p253 = pneg %p60
        %p254 = pneg %p89
        %p255 = pneg %p86
        %p256 = pneg %p115
        %p257 = pneg %p112
        %p258 = pneg %p145
        %p259 = pneg %p142
        %s260 = sand.u32 %s132, 1
        %s261 = scalar_lea.sflag [#allocation4], %s260
        %s262 = sand.u32 %s132, 1
        %s263 = smul.addr %s262, 128
        %s264 = scalar_lea.vmem [#allocation8], %s263
        %s265 = smul.u32 8, %s28
        %s266 = smul.u32 4, %s26
        %s267 = smul.u32 4, %s26
        %s268 = smul.u32 8, %s28
        %s269 = smul.u32 4, %s26
        %v270 = vld [vmem:[%s231] sm:$0xff]
        %v271 = vld [vmem:[%s231 + $0x8] sm:$0xff]
        %v272 = vld [vmem:[%s231 + $0x10] sm:$0xff]
        %v273 = vld [vmem:[%s231 + $0x18] sm:$0xff]
        %v274 = vld [vmem:[%s231 + $0x20] sm:$0xff]
        %v275 = vld [vmem:[%s231 + $0x28] sm:$0xff]
        %v276 = vld [vmem:[%s231 + $0x30] sm:$0xff]
        %v277 = vld [vmem:[%s231 + $0x38] sm:$0xff]
        %v278 = vld [vmem:[%s231 + $0x40] sm:$0xff]
        %v279 = vld [vmem:[%s231 + $0x48] sm:$0xff]
        %v280 = vld [vmem:[%s231 + $0x50] sm:$0xff]
        %v281 = vld [vmem:[%s231 + $0x58] sm:$0xff]
        %v282 = vld [vmem:[%s231 + $0x60] sm:$0xff]
        %v283 = vld [vmem:[%s231 + $0x68] sm:$0xff]
        %v284 = vld [vmem:[%s231 + $0x70] sm:$0xff]
        %v285 = vld [vmem:[%s231 + $0x78] sm:$0xff]
        %v286 = vld [vmem:[#allocation5] sm:$0xff]
        %v287 = vld [vmem:[#allocation5 + $0x8] sm:$0xff]
        %v288 = vld [vmem:[#allocation5 + $0x10] sm:$0xff]
        %v289 = vld [vmem:[#allocation5 + $0x18] sm:$0xff]
        %v290 = vld [vmem:[#allocation5 + $0x20] sm:$0xff]
        %v291 = vld [vmem:[#allocation5 + $0x28] sm:$0xff]
        %v292 = vld [vmem:[#allocation5 + $0x30] sm:$0xff]
        %v293 = vld [vmem:[#allocation5 + $0x38] sm:$0xff]
        %v294 = vld [vmem:[#allocation5 + $0x40] sm:$0xff]
        %v295 = vld [vmem:[#allocation5 + $0x48] sm:$0xff]
        %v296 = vld [vmem:[#allocation5 + $0x50] sm:$0xff]
        %v297 = vld [vmem:[#allocation5 + $0x58] sm:$0xff]
        %v298 = vld [vmem:[#allocation5 + $0x60] sm:$0xff]
        %v299 = vld [vmem:[#allocation5 + $0x68] sm:$0xff]
        %v300 = vld [vmem:[#allocation5 + $0x70] sm:$0xff]
        %v301 = vld [vmem:[#allocation5 + $0x78] sm:$0xff]
        %v302 = vld [vmem:[#allocation5 + $0x80] sm:$0xff]
        %v303 = vld [vmem:[#allocation5 + $0x88] sm:$0xff]
        %v304 = vld [vmem:[#allocation5 + $0x90] sm:$0xff]
        %v305 = vld [vmem:[#allocation5 + $0x98] sm:$0xff]
        %v306 = vld [vmem:[#allocation5 + $0xa0] sm:$0xff]
        %v307 = vld [vmem:[#allocation5 + $0xa8] sm:$0xff]
        %v308 = vld [vmem:[#allocation5 + $0xb0] sm:$0xff]
        %v309 = vld [vmem:[#allocation5 + $0xb8] sm:$0xff]
        %v310 = vld [vmem:[#allocation5 + $0xc0] sm:$0xff]
        %v311 = vld [vmem:[#allocation5 + $0xc8] sm:$0xff]
        %v312 = vld [vmem:[#allocation5 + $0xd0] sm:$0xff]
        %v313 = vld [vmem:[#allocation5 + $0xd8] sm:$0xff]
        %v314 = vld [vmem:[#allocation5 + $0xe0] sm:$0xff]
        %v315 = vld [vmem:[#allocation5 + $0xe8] sm:$0xff]
        %v316 = vld [vmem:[#allocation5 + $0xf0] sm:$0xff]
        %v317 = vld [vmem:[#allocation5 + $0xf8] sm:$0xff]
        %v318 = vld [vmem:[#allocation5 + $0x100] sm:$0xff]
        %v319 = vld [vmem:[#allocation5 + $0x108] sm:$0xff]
        %v320 = vld [vmem:[#allocation5 + $0x110] sm:$0xff]
        %v321 = vld [vmem:[#allocation5 + $0x118] sm:$0xff]
        %v322 = vld [vmem:[#allocation5 + $0x120] sm:$0xff]
        %v323 = vld [vmem:[#allocation5 + $0x128] sm:$0xff]
        %v324 = vld [vmem:[#allocation5 + $0x130] sm:$0xff]
        %v325 = vld [vmem:[#allocation5 + $0x138] sm:$0xff]
        %v326 = vld [vmem:[#allocation5 + $0x140] sm:$0xff]
        %v327 = vld [vmem:[#allocation5 + $0x148] sm:$0xff]
        %v328 = vld [vmem:[#allocation5 + $0x150] sm:$0xff]
        %v329 = vld [vmem:[#allocation5 + $0x158] sm:$0xff]
        %v330 = vld [vmem:[#allocation5 + $0x160] sm:$0xff]
        %v331 = vld [vmem:[#allocation5 + $0x168] sm:$0xff]
        %v332 = vld [vmem:[#allocation5 + $0x170] sm:$0xff]
        %v333 = vld [vmem:[#allocation5 + $0x178] sm:$0xff]
        %v334 = vld [vmem:[#allocation5 + $0x180] sm:$0xff]
        %v335 = vld [vmem:[#allocation5 + $0x188] sm:$0xff]
        %v336 = vld [vmem:[#allocation5 + $0x190] sm:$0xff]
        %v337 = vld [vmem:[#allocation5 + $0x198] sm:$0xff]
        %v338 = vld [vmem:[#allocation5 + $0x1a0] sm:$0xff]
        %v339 = vld [vmem:[#allocation5 + $0x1a8] sm:$0xff]
        %v340 = vld [vmem:[#allocation5 + $0x1b0] sm:$0xff]
        %v341 = vld [vmem:[#allocation5 + $0x1b8] sm:$0xff]
        %v342 = vld [vmem:[#allocation5 + $0x1c0] sm:$0xff]
        %v343 = vld [vmem:[#allocation5 + $0x1c8] sm:$0xff]
        %v344 = vld [vmem:[#allocation5 + $0x1d0] sm:$0xff]
        %v345 = vld [vmem:[#allocation5 + $0x1d8] sm:$0xff]
        %v346 = vld [vmem:[#allocation5 + $0x1e0] sm:$0xff]
        %v347 = vld [vmem:[#allocation5 + $0x1e8] sm:$0xff]
        %v348 = vld [vmem:[#allocation5 + $0x1f0] sm:$0xff]
        %v349 = vld [vmem:[#allocation5 + $0x1f8] sm:$0xff]
        %v350 = vld [vmem:[#allocation5 + $0x200] sm:$0xff]
        %v351 = vld [vmem:[#allocation5 + $0x208] sm:$0xff]
        %v352 = vld [vmem:[#allocation5 + $0x210] sm:$0xff]
        %v353 = vld [vmem:[#allocation5 + $0x218] sm:$0xff]
        %v354 = vld [vmem:[#allocation5 + $0x220] sm:$0xff]
        %v355 = vld [vmem:[#allocation5 + $0x228] sm:$0xff]
        %v356 = vld [vmem:[#allocation5 + $0x230] sm:$0xff]
        %v357 = vld [vmem:[#allocation5 + $0x238] sm:$0xff]
        %v358 = vld [vmem:[#allocation5 + $0x240] sm:$0xff]
        %v359 = vld [vmem:[#allocation5 + $0x248] sm:$0xff]
        %v360 = vld [vmem:[#allocation5 + $0x250] sm:$0xff]
        %v361 = vld [vmem:[#allocation5 + $0x258] sm:$0xff]
        %v362 = vld [vmem:[#allocation5 + $0x260] sm:$0xff]
        %v363 = vld [vmem:[#allocation5 + $0x268] sm:$0xff]
        %v364 = vld [vmem:[#allocation5 + $0x270] sm:$0xff]
        %v365 = vld [vmem:[#allocation5 + $0x278] sm:$0xff]
        %v366 = vld [vmem:[#allocation5 + $0x280] sm:$0xff]
        %v367 = vld [vmem:[#allocation5 + $0x288] sm:$0xff]
        %v368 = vld [vmem:[#allocation5 + $0x290] sm:$0xff]
        %v369 = vld [vmem:[#allocation5 + $0x298] sm:$0xff]
        %v370 = vld [vmem:[#allocation5 + $0x2a0] sm:$0xff]
        %v371 = vld [vmem:[#allocation5 + $0x2a8] sm:$0xff]
        %v372 = vld [vmem:[#allocation5 + $0x2b0] sm:$0xff]
        %v373 = vld [vmem:[#allocation5 + $0x2b8] sm:$0xff]
        %v374 = vld [vmem:[#allocation5 + $0x2c0] sm:$0xff]
        %v375 = vld [vmem:[#allocation5 + $0x2c8] sm:$0xff]
        %v376 = vld [vmem:[#allocation5 + $0x2d0] sm:$0xff]
        %v377 = vld [vmem:[#allocation5 + $0x2d8] sm:$0xff]
        %v378 = vld [vmem:[#allocation5 + $0x2e0] sm:$0xff]
        %v379 = vld [vmem:[#allocation5 + $0x2e8] sm:$0xff]
        %v380 = vld [vmem:[#allocation5 + $0x2f0] sm:$0xff]
        %v381 = vld [vmem:[#allocation5 + $0x2f8] sm:$0xff]
        %v382 = vld [vmem:[#allocation5 + $0x300] sm:$0xff]
        %v383 = vld [vmem:[#allocation5 + $0x308] sm:$0xff]
        %v384 = vld [vmem:[#allocation5 + $0x310] sm:$0xff]
        %v385 = vld [vmem:[#allocation5 + $0x318] sm:$0xff]
        %v386 = vld [vmem:[#allocation5 + $0x320] sm:$0xff]
        %v387 = vld [vmem:[#allocation5 + $0x328] sm:$0xff]
        %v388 = vld [vmem:[#allocation5 + $0x330] sm:$0xff]
        %v389 = vld [vmem:[#allocation5 + $0x338] sm:$0xff]
        %v390 = vld [vmem:[#allocation5 + $0x340] sm:$0xff]
        %v391 = vld [vmem:[#allocation5 + $0x348] sm:$0xff]
        %v392 = vld [vmem:[#allocation5 + $0x350] sm:$0xff]
        %v393 = vld [vmem:[#allocation5 + $0x358] sm:$0xff]
        %v394 = vld [vmem:[#allocation5 + $0x360] sm:$0xff]
        %v395 = vld [vmem:[#allocation5 + $0x368] sm:$0xff]
        %v396 = vld [vmem:[#allocation5 + $0x370] sm:$0xff]
        %v397 = vld [vmem:[#allocation5 + $0x378] sm:$0xff]
        %v398 = vld [vmem:[#allocation5 + $0x380] sm:$0xff]
        %v399 = vld [vmem:[#allocation5 + $0x388] sm:$0xff]
        %v400 = vld [vmem:[#allocation5 + $0x390] sm:$0xff]
        %v401 = vld [vmem:[#allocation5 + $0x398] sm:$0xff]
        %v402 = vld [vmem:[#allocation5 + $0x3a0] sm:$0xff]
        %v403 = vld [vmem:[#allocation5 + $0x3a8] sm:$0xff]
        %v404 = vld [vmem:[#allocation5 + $0x3b0] sm:$0xff]
        %v405 = vld [vmem:[#allocation5 + $0x3b8] sm:$0xff]
        %v406 = vld [vmem:[#allocation5 + $0x3c0] sm:$0xff]
        %v407 = vld [vmem:[#allocation5 + $0x3c8] sm:$0xff]
        %v408 = vld [vmem:[#allocation5 + $0x3d0] sm:$0xff]
        %v409 = vld [vmem:[#allocation5 + $0x3d8] sm:$0xff]
        %v410 = vld [vmem:[#allocation5 + $0x3e0] sm:$0xff]
        %v411 = vld [vmem:[#allocation5 + $0x3e8] sm:$0xff]
        %v412 = vld [vmem:[#allocation5 + $0x3f0] sm:$0xff]
        %v413 = vld [vmem:[#allocation5 + $0x3f8] sm:$0xff]
        %v414 = vld [vmem:[#allocation7] sm:$0xf]
        %v416 = vperm.slane %v414, 0
        %v417 = vperm.slane %v414, 1
        %v418 = vperm.slane %v414, 2
        %v419 = vperm.slane %v414, 3
        %v440 = vunpack.c.l.b16 %v270
        %v441 = vunpack.c.h.b16 %v270
        %v442 = vunpack.c.l.b16 %v271
        %v443 = vunpack.c.h.b16 %v271
        %v444 = vunpack.c.l.b16 %v272
        %v445 = vunpack.c.h.b16 %v272
        %v446 = vunpack.c.l.b16 %v273
        %v447 = vunpack.c.h.b16 %v273
        %v448 = vunpack.c.l.b16 %v274
        %v449 = vunpack.c.h.b16 %v274
        %v450 = vunpack.c.l.b16 %v275
        %v451 = vunpack.c.h.b16 %v275
        %v452 = vunpack.c.l.b16 %v276
        %v453 = vunpack.c.h.b16 %v276
        %v454 = vunpack.c.l.b16 %v277
        %v455 = vunpack.c.h.b16 %v277
        %v456 = vunpack.c.l.b16 %v278
        %v457 = vunpack.c.h.b16 %v278
        %v458 = vunpack.c.l.b16 %v279
        %v459 = vunpack.c.h.b16 %v279
        %v460 = vunpack.c.l.b16 %v280
        %v461 = vunpack.c.h.b16 %v280
        %v462 = vunpack.c.l.b16 %v281
        %v463 = vunpack.c.h.b16 %v281
        %v464 = vunpack.c.l.b16 %v282
        %v465 = vunpack.c.h.b16 %v282
        %v466 = vunpack.c.l.b16 %v283
        %v467 = vunpack.c.h.b16 %v283
        %v468 = vunpack.c.l.b16 %v284
        %v469 = vunpack.c.h.b16 %v284
        %v470 = vunpack.c.l.b16 %v285
        %v471 = vunpack.c.h.b16 %v285
        %v472 = vpack.c.b16 %v444, %v440
        %v473 = vpack.c.b16 %v445, %v441
        %v474 = vpack.c.b16 %v446, %v442
        %v475 = vpack.c.b16 %v447, %v443
        %v476 = vpack.c.b16 %v452, %v448
        %v477 = vpack.c.b16 %v453, %v449
        %v478 = vpack.c.b16 %v454, %v450
        %v479 = vpack.c.b16 %v455, %v451
        %v480 = vpack.c.b16 %v460, %v456
        %v481 = vpack.c.b16 %v461, %v457
        %v482 = vpack.c.b16 %v462, %v458
        %v483 = vpack.c.b16 %v463, %v459
        %v484 = vpack.c.b16 %v468, %v464
        %v485 = vpack.c.b16 %v469, %v465
        %v486 = vpack.c.b16 %v470, %v466
        %v487 = vpack.c.b16 %v471, %v467
        %v632 = vunpack.c.l.b16 %v286
        %v633 = vunpack.c.h.b16 %v286
        %v634 = vunpack.c.l.b16 %v287
        %v635 = vunpack.c.h.b16 %v287
        %v636 = vunpack.c.l.b16 %v288
        %v637 = vunpack.c.h.b16 %v288
        %v638 = vunpack.c.l.b16 %v289
        %v639 = vunpack.c.h.b16 %v289
        %v640 = vunpack.c.l.b16 %v290
        %v641 = vunpack.c.h.b16 %v290
        %v642 = vunpack.c.l.b16 %v291
        %v643 = vunpack.c.h.b16 %v291
        %v644 = vunpack.c.l.b16 %v292
        %v645 = vunpack.c.h.b16 %v292
        %v646 = vunpack.c.l.b16 %v293
        %v647 = vunpack.c.h.b16 %v293
        %v648 = vunpack.c.l.b16 %v294
        %v649 = vunpack.c.h.b16 %v294
        %v650 = vunpack.c.l.b16 %v295
        %v651 = vunpack.c.h.b16 %v295
        %v652 = vunpack.c.l.b16 %v296
        %v653 = vunpack.c.h.b16 %v296
        %v654 = vunpack.c.l.b16 %v297
        %v655 = vunpack.c.h.b16 %v297
        %v656 = vunpack.c.l.b16 %v298
        %v657 = vunpack.c.h.b16 %v298
        %v658 = vunpack.c.l.b16 %v299
        %v659 = vunpack.c.h.b16 %v299
        %v660 = vunpack.c.l.b16 %v300
        %v661 = vunpack.c.h.b16 %v300
        %v662 = vunpack.c.l.b16 %v301
        %v663 = vunpack.c.h.b16 %v301
        %v664 = vunpack.c.l.b16 %v302
        %v665 = vunpack.c.h.b16 %v302
        %v666 = vunpack.c.l.b16 %v303
        %v667 = vunpack.c.h.b16 %v303
        %v668 = vunpack.c.l.b16 %v304
        %v669 = vunpack.c.h.b16 %v304
        %v670 = vunpack.c.l.b16 %v305
        %v671 = vunpack.c.h.b16 %v305
        %v672 = vunpack.c.l.b16 %v306
        %v673 = vunpack.c.h.b16 %v306
        %v674 = vunpack.c.l.b16 %v307
        %v675 = vunpack.c.h.b16 %v307
        %v676 = vunpack.c.l.b16 %v308
        %v677 = vunpack.c.h.b16 %v308
        %v678 = vunpack.c.l.b16 %v309
        %v679 = vunpack.c.h.b16 %v309
        %v680 = vunpack.c.l.b16 %v310
        %v681 = vunpack.c.h.b16 %v310
        %v682 = vunpack.c.l.b16 %v311
        %v683 = vunpack.c.h.b16 %v311
        %v684 = vunpack.c.l.b16 %v312
        %v685 = vunpack.c.h.b16 %v312
        %v686 = vunpack.c.l.b16 %v313
        %v687 = vunpack.c.h.b16 %v313
        %v688 = vunpack.c.l.b16 %v314
        %v689 = vunpack.c.h.b16 %v314
        %v690 = vunpack.c.l.b16 %v315
        %v691 = vunpack.c.h.b16 %v315
        %v692 = vunpack.c.l.b16 %v316
        %v693 = vunpack.c.h.b16 %v316
        %v694 = vunpack.c.l.b16 %v317
        %v695 = vunpack.c.h.b16 %v317
        %v696 = vunpack.c.l.b16 %v318
        %v697 = vunpack.c.h.b16 %v318
        %v698 = vunpack.c.l.b16 %v319
        %v699 = vunpack.c.h.b16 %v319
        %v700 = vunpack.c.l.b16 %v320
        %v701 = vunpack.c.h.b16 %v320
        %v702 = vunpack.c.l.b16 %v321
        %v703 = vunpack.c.h.b16 %v321
        %v704 = vunpack.c.l.b16 %v322
        %v705 = vunpack.c.h.b16 %v322
        %v706 = vunpack.c.l.b16 %v323
        %v707 = vunpack.c.h.b16 %v323
        %v708 = vunpack.c.l.b16 %v324
        %v709 = vunpack.c.h.b16 %v324
        %v710 = vunpack.c.l.b16 %v325
        %v711 = vunpack.c.h.b16 %v325
        %v712 = vunpack.c.l.b16 %v326
        %v713 = vunpack.c.h.b16 %v326
        %v714 = vunpack.c.l.b16 %v327
        %v715 = vunpack.c.h.b16 %v327
        %v716 = vunpack.c.l.b16 %v328
        %v717 = vunpack.c.h.b16 %v328
        %v718 = vunpack.c.l.b16 %v329
        %v719 = vunpack.c.h.b16 %v329
        %v720 = vunpack.c.l.b16 %v330
        %v721 = vunpack.c.h.b16 %v330
        %v722 = vunpack.c.l.b16 %v331
        %v723 = vunpack.c.h.b16 %v331
        %v724 = vunpack.c.l.b16 %v332
        %v725 = vunpack.c.h.b16 %v332
        %v726 = vunpack.c.l.b16 %v333
        %v727 = vunpack.c.h.b16 %v333
        %v728 = vunpack.c.l.b16 %v334
        %v729 = vunpack.c.h.b16 %v334
        %v730 = vunpack.c.l.b16 %v335
        %v731 = vunpack.c.h.b16 %v335
        %v732 = vunpack.c.l.b16 %v336
        %v733 = vunpack.c.h.b16 %v336
        %v734 = vunpack.c.l.b16 %v337
        %v735 = vunpack.c.h.b16 %v337
        %v736 = vunpack.c.l.b16 %v338
        %v737 = vunpack.c.h.b16 %v338
        %v738 = vunpack.c.l.b16 %v339
        %v739 = vunpack.c.h.b16 %v339
        %v740 = vunpack.c.l.b16 %v340
        %v741 = vunpack.c.h.b16 %v340
        %v742 = vunpack.c.l.b16 %v341
        %v743 = vunpack.c.h.b16 %v341
        %v744 = vunpack.c.l.b16 %v342
        %v745 = vunpack.c.h.b16 %v342
        %v746 = vunpack.c.l.b16 %v343
        %v747 = vunpack.c.h.b16 %v343
        %v748 = vunpack.c.l.b16 %v344
        %v749 = vunpack.c.h.b16 %v344
        %v750 = vunpack.c.l.b16 %v345
        %v751 = vunpack.c.h.b16 %v345
        %v752 = vunpack.c.l.b16 %v346
        %v753 = vunpack.c.h.b16 %v346
        %v754 = vunpack.c.l.b16 %v347
        %v755 = vunpack.c.h.b16 %v347
        %v756 = vunpack.c.l.b16 %v348
        %v757 = vunpack.c.h.b16 %v348
        %v758 = vunpack.c.l.b16 %v349
        %v759 = vunpack.c.h.b16 %v349
        %v760 = vunpack.c.l.b16 %v350
        %v761 = vunpack.c.h.b16 %v350
        %v762 = vunpack.c.l.b16 %v351
        %v763 = vunpack.c.h.b16 %v351
        %v764 = vunpack.c.l.b16 %v352
        %v765 = vunpack.c.h.b16 %v352
        %v766 = vunpack.c.l.b16 %v353
        %v767 = vunpack.c.h.b16 %v353
        %v768 = vunpack.c.l.b16 %v354
        %v769 = vunpack.c.h.b16 %v354
        %v770 = vunpack.c.l.b16 %v355
        %v771 = vunpack.c.h.b16 %v355
        %v772 = vunpack.c.l.b16 %v356
        %v773 = vunpack.c.h.b16 %v356
        %v774 = vunpack.c.l.b16 %v357
        %v775 = vunpack.c.h.b16 %v357
        %v776 = vunpack.c.l.b16 %v358
        %v777 = vunpack.c.h.b16 %v358
        %v778 = vunpack.c.l.b16 %v359
        %v779 = vunpack.c.h.b16 %v359
        %v780 = vunpack.c.l.b16 %v360
        %v781 = vunpack.c.h.b16 %v360
        %v782 = vunpack.c.l.b16 %v361
        %v783 = vunpack.c.h.b16 %v361
        %v784 = vunpack.c.l.b16 %v362
        %v785 = vunpack.c.h.b16 %v362
        %v786 = vunpack.c.l.b16 %v363
        %v787 = vunpack.c.h.b16 %v363
        %v788 = vunpack.c.l.b16 %v364
        %v789 = vunpack.c.h.b16 %v364
        %v790 = vunpack.c.l.b16 %v365
        %v791 = vunpack.c.h.b16 %v365
        %v792 = vunpack.c.l.b16 %v366
        %v793 = vunpack.c.h.b16 %v366
        %v794 = vunpack.c.l.b16 %v367
        %v795 = vunpack.c.h.b16 %v367
        %v796 = vunpack.c.l.b16 %v368
        %v797 = vunpack.c.h.b16 %v368
        %v798 = vunpack.c.l.b16 %v369
        %v799 = vunpack.c.h.b16 %v369
        %v800 = vunpack.c.l.b16 %v370
        %v801 = vunpack.c.h.b16 %v370
        %v802 = vunpack.c.l.b16 %v371
        %v803 = vunpack.c.h.b16 %v371
        %v804 = vunpack.c.l.b16 %v372
        %v805 = vunpack.c.h.b16 %v372
        %v806 = vunpack.c.l.b16 %v373
        %v807 = vunpack.c.h.b16 %v373
        %v808 = vunpack.c.l.b16 %v374
        %v809 = vunpack.c.h.b16 %v374
        %v810 = vunpack.c.l.b16 %v375
        %v811 = vunpack.c.h.b16 %v375
        %v812 = vunpack.c.l.b16 %v376
        %v813 = vunpack.c.h.b16 %v376
        %v814 = vunpack.c.l.b16 %v377
        %v815 = vunpack.c.h.b16 %v377
        %v816 = vunpack.c.l.b16 %v378
        %v817 = vunpack.c.h.b16 %v378
        %v818 = vunpack.c.l.b16 %v379
        %v819 = vunpack.c.h.b16 %v379
        %v820 = vunpack.c.l.b16 %v380
        %v821 = vunpack.c.h.b16 %v380
        %v822 = vunpack.c.l.b16 %v381
        %v823 = vunpack.c.h.b16 %v381
        %v824 = vunpack.c.l.b16 %v382
        %v825 = vunpack.c.h.b16 %v382
        %v826 = vunpack.c.l.b16 %v383
        %v827 = vunpack.c.h.b16 %v383
        %v828 = vunpack.c.l.b16 %v384
        %v829 = vunpack.c.h.b16 %v384
        %v830 = vunpack.c.l.b16 %v385
        %v831 = vunpack.c.h.b16 %v385
        %v832 = vunpack.c.l.b16 %v386
        %v833 = vunpack.c.h.b16 %v386
        %v834 = vunpack.c.l.b16 %v387
        %v835 = vunpack.c.h.b16 %v387
        %v836 = vunpack.c.l.b16 %v388
        %v837 = vunpack.c.h.b16 %v388
        %v838 = vunpack.c.l.b16 %v389
        %v839 = vunpack.c.h.b16 %v389
        %v840 = vunpack.c.l.b16 %v390
        %v841 = vunpack.c.h.b16 %v390
        %v842 = vunpack.c.l.b16 %v391
        %v843 = vunpack.c.h.b16 %v391
        %v844 = vunpack.c.l.b16 %v392
        %v845 = vunpack.c.h.b16 %v392
        %v846 = vunpack.c.l.b16 %v393
        %v847 = vunpack.c.h.b16 %v393
        %v848 = vunpack.c.l.b16 %v394
        %v849 = vunpack.c.h.b16 %v394
        %v850 = vunpack.c.l.b16 %v395
        %v851 = vunpack.c.h.b16 %v395
        %v852 = vunpack.c.l.b16 %v396
        %v853 = vunpack.c.h.b16 %v396
        %v854 = vunpack.c.l.b16 %v397
        %v855 = vunpack.c.h.b16 %v397
        %v856 = vunpack.c.l.b16 %v398
        %v857 = vunpack.c.h.b16 %v398
        %v858 = vunpack.c.l.b16 %v399
        %v859 = vunpack.c.h.b16 %v399
        %v860 = vunpack.c.l.b16 %v400
        %v861 = vunpack.c.h.b16 %v400
        %v862 = vunpack.c.l.b16 %v401
        %v863 = vunpack.c.h.b16 %v401
        %v864 = vunpack.c.l.b16 %v402
        %v865 = vunpack.c.h.b16 %v402
        %v866 = vunpack.c.l.b16 %v403
        %v867 = vunpack.c.h.b16 %v403
        %v868 = vunpack.c.l.b16 %v404
        %v869 = vunpack.c.h.b16 %v404
        %v870 = vunpack.c.l.b16 %v405
        %v871 = vunpack.c.h.b16 %v405
        %v872 = vunpack.c.l.b16 %v406
        %v873 = vunpack.c.h.b16 %v406
        %v874 = vunpack.c.l.b16 %v407
        %v875 = vunpack.c.h.b16 %v407
        %v876 = vunpack.c.l.b16 %v408
        %v877 = vunpack.c.h.b16 %v408
        %v878 = vunpack.c.l.b16 %v409
        %v879 = vunpack.c.h.b16 %v409
        %v880 = vunpack.c.l.b16 %v410
        %v881 = vunpack.c.h.b16 %v410
        %v882 = vunpack.c.l.b16 %v411
        %v883 = vunpack.c.h.b16 %v411
        %v884 = vunpack.c.l.b16 %v412
        %v885 = vunpack.c.h.b16 %v412
        %v886 = vunpack.c.l.b16 %v413
        %v887 = vunpack.c.h.b16 %v413
        %v888 = vpack.c.b16 %v636, %v632
        %v889 = vpack.c.b16 %v637, %v633
        %v890 = vpack.c.b16 %v638, %v634
        %v891 = vpack.c.b16 %v639, %v635
        %v892 = vpack.c.b16 %v644, %v640
        %v893 = vpack.c.b16 %v645, %v641
        %v894 = vpack.c.b16 %v646, %v642
        %v895 = vpack.c.b16 %v647, %v643
        %v896 = vpack.c.b16 %v652, %v648
        %v897 = vpack.c.b16 %v653, %v649
        %v898 = vpack.c.b16 %v654, %v650
        %v899 = vpack.c.b16 %v655, %v651
        %v900 = vpack.c.b16 %v660, %v656
        %v901 = vpack.c.b16 %v661, %v657
        %v902 = vpack.c.b16 %v662, %v658
        %v903 = vpack.c.b16 %v663, %v659
        %v904 = vpack.c.b16 %v668, %v664
        %v905 = vpack.c.b16 %v669, %v665
        %v906 = vpack.c.b16 %v670, %v666
        %v907 = vpack.c.b16 %v671, %v667
        %v908 = vpack.c.b16 %v676, %v672
        %v909 = vpack.c.b16 %v677, %v673
        %v910 = vpack.c.b16 %v678, %v674
        %v911 = vpack.c.b16 %v679, %v675
        %v912 = vpack.c.b16 %v684, %v680
        %v913 = vpack.c.b16 %v685, %v681
        %v914 = vpack.c.b16 %v686, %v682
        %v915 = vpack.c.b16 %v687, %v683
        %v916 = vpack.c.b16 %v692, %v688
        %v917 = vpack.c.b16 %v693, %v689
        %v918 = vpack.c.b16 %v694, %v690
        %v919 = vpack.c.b16 %v695, %v691
        %v920 = vpack.c.b16 %v700, %v696
        %v921 = vpack.c.b16 %v701, %v697
        %v922 = vpack.c.b16 %v702, %v698
        %v923 = vpack.c.b16 %v703, %v699
        %v924 = vpack.c.b16 %v708, %v704
        %v925 = vpack.c.b16 %v709, %v705
        %v926 = vpack.c.b16 %v710, %v706
        %v927 = vpack.c.b16 %v711, %v707
        %v928 = vpack.c.b16 %v716, %v712
        %v929 = vpack.c.b16 %v717, %v713
        %v930 = vpack.c.b16 %v718, %v714
        %v931 = vpack.c.b16 %v719, %v715
        %v932 = vpack.c.b16 %v724, %v720
        %v933 = vpack.c.b16 %v725, %v721
        %v934 = vpack.c.b16 %v726, %v722
        %v935 = vpack.c.b16 %v727, %v723
        %v936 = vpack.c.b16 %v732, %v728
        %v937 = vpack.c.b16 %v733, %v729
        %v938 = vpack.c.b16 %v734, %v730
        %v939 = vpack.c.b16 %v735, %v731
        %v940 = vpack.c.b16 %v740, %v736
        %v941 = vpack.c.b16 %v741, %v737
        %v942 = vpack.c.b16 %v742, %v738
        %v943 = vpack.c.b16 %v743, %v739
        %v944 = vpack.c.b16 %v748, %v744
        %v945 = vpack.c.b16 %v749, %v745
        %v946 = vpack.c.b16 %v750, %v746
        %v947 = vpack.c.b16 %v751, %v747
        %v948 = vpack.c.b16 %v756, %v752
        %v949 = vpack.c.b16 %v757, %v753
        %v950 = vpack.c.b16 %v758, %v754
        %v951 = vpack.c.b16 %v759, %v755
        %v952 = vpack.c.b16 %v764, %v760
        %v953 = vpack.c.b16 %v765, %v761
        %v954 = vpack.c.b16 %v766, %v762
        %v955 = vpack.c.b16 %v767, %v763
        %v956 = vpack.c.b16 %v772, %v768
        %v957 = vpack.c.b16 %v773, %v769
        %v958 = vpack.c.b16 %v774, %v770
        %v959 = vpack.c.b16 %v775, %v771
        %v960 = vpack.c.b16 %v780, %v776
        %v961 = vpack.c.b16 %v781, %v777
        %v962 = vpack.c.b16 %v782, %v778
        %v963 = vpack.c.b16 %v783, %v779
        %v964 = vpack.c.b16 %v788, %v784
        %v965 = vpack.c.b16 %v789, %v785
        %v966 = vpack.c.b16 %v790, %v786
        %v967 = vpack.c.b16 %v791, %v787
        %v968 = vpack.c.b16 %v796, %v792
        %v969 = vpack.c.b16 %v797, %v793
        %v970 = vpack.c.b16 %v798, %v794
        %v971 = vpack.c.b16 %v799, %v795
        %v972 = vpack.c.b16 %v804, %v800
        %v973 = vpack.c.b16 %v805, %v801
        %v974 = vpack.c.b16 %v806, %v802
        %v975 = vpack.c.b16 %v807, %v803
        %v976 = vpack.c.b16 %v812, %v808
        %v977 = vpack.c.b16 %v813, %v809
        %v978 = vpack.c.b16 %v814, %v810
        %v979 = vpack.c.b16 %v815, %v811
        %v980 = vpack.c.b16 %v820, %v816
        %v981 = vpack.c.b16 %v821, %v817
        %v982 = vpack.c.b16 %v822, %v818
        %v983 = vpack.c.b16 %v823, %v819
        %v984 = vpack.c.b16 %v828, %v824
        %v985 = vpack.c.b16 %v829, %v825
        %v986 = vpack.c.b16 %v830, %v826
        %v987 = vpack.c.b16 %v831, %v827
        %v988 = vpack.c.b16 %v836, %v832
        %v989 = vpack.c.b16 %v837, %v833
        %v990 = vpack.c.b16 %v838, %v834
        %v991 = vpack.c.b16 %v839, %v835
        %v992 = vpack.c.b16 %v844, %v840
        %v993 = vpack.c.b16 %v845, %v841
        %v994 = vpack.c.b16 %v846, %v842
        %v995 = vpack.c.b16 %v847, %v843
        %v996 = vpack.c.b16 %v852, %v848
        %v997 = vpack.c.b16 %v853, %v849
        %v998 = vpack.c.b16 %v854, %v850
        %v999 = vpack.c.b16 %v855, %v851
        %v1000 = vpack.c.b16 %v860, %v856
        %v1001 = vpack.c.b16 %v861, %v857
        %v1002 = vpack.c.b16 %v862, %v858
        %v1003 = vpack.c.b16 %v863, %v859
        %v1004 = vpack.c.b16 %v868, %v864
        %v1005 = vpack.c.b16 %v869, %v865
        %v1006 = vpack.c.b16 %v870, %v866
        %v1007 = vpack.c.b16 %v871, %v867
        %v1008 = vpack.c.b16 %v876, %v872
        %v1009 = vpack.c.b16 %v877, %v873
        %v1010 = vpack.c.b16 %v878, %v874
        %v1011 = vpack.c.b16 %v879, %v875
        %v1012 = vpack.c.b16 %v884, %v880
        %v1013 = vpack.c.b16 %v885, %v881
        %v1014 = vpack.c.b16 %v886, %v882
        %v1015 = vpack.c.b16 %v887, %v883
        %1144 = vmatpush.bf16.msra.mxu0 %v916
        %1145 = vmatpush.bf16.msra.mxu0 %v912
        %1146 = vmatpush.bf16.msra.mxu0 %v908
        %1147 = vmatpush.bf16.msra.mxu0 %v904
        %1148 = vmatpush.bf16.msra.mxu0 %v900
        %1149 = vmatpush.bf16.msra.mxu0 %v896
        %1150 = vmatpush.bf16.msra.mxu0 %v892
        %1151 = vmatpush.bf16.msra.mxu0 %v888
        %1152 = vmatmul.bf16.gmra.mxu0 %v472
        %v1153 = vpop.f32.mrf.mxu0
        %v1154 = vadd.f32 %v416, %v1153
        %v1155 = vpop.f32.mrf.mxu0
        %v1156 = vadd.f32 %v416, %v1155
        %1157 = vmatmul.bf16.gmra.mxu0 %v476
        %v1158 = vpop.f32.mrf.mxu0
        %v1159 = vadd.f32 %v416, %v1158
        %v1160 = vpop.f32.mrf.mxu0
        %v1161 = vadd.f32 %v416, %v1160
        %1162 = vmatmul.bf16.gmra.mxu0 %v480
        %v1163 = vpop.f32.mrf.mxu0
        %v1164 = vadd.f32 %v416, %v1163
        %v1165 = vpop.f32.mrf.mxu0
        %v1166 = vadd.f32 %v416, %v1165
        %1167 = vmatmul.bf16.gmra.mxu0 %v484
        %v1168 = vpop.f32.mrf.mxu0
        %v1169 = vadd.f32 %v416, %v1168
        %v1170 = vpop.f32.mrf.mxu0
        %v1171 = vadd.f32 %v416, %v1170
        %1172 = vdwg.mxu0
        %1173 = vmatpush.bf16.msra.mxu0 %v948
        %1174 = vmatpush.bf16.msra.mxu0 %v944
        %1175 = vmatpush.bf16.msra.mxu0 %v940
        %1176 = vmatpush.bf16.msra.mxu0 %v936
        %1177 = vmatpush.bf16.msra.mxu0 %v932
        %1178 = vmatpush.bf16.msra.mxu0 %v928
        %1179 = vmatpush.bf16.msra.mxu0 %v924
        %1180 = vmatpush.bf16.msra.mxu0 %v920
        %1181 = vmatmul.bf16.gmra.mxu0 %v473
        %v1182 = vpop.f32.mrf.mxu0
        %v1183 = vadd.f32 %v1154, %v1182
        %v1184 = vpop.f32.mrf.mxu0
        %v1185 = vadd.f32 %v1156, %v1184
        %1186 = vmatmul.bf16.gmra.mxu0 %v477
        %v1187 = vpop.f32.mrf.mxu0
        %v1188 = vadd.f32 %v1159, %v1187
        %v1189 = vpop.f32.mrf.mxu0
        %v1190 = vadd.f32 %v1161, %v1189
        %1191 = vmatmul.bf16.gmra.mxu0 %v481
        %v1192 = vpop.f32.mrf.mxu0
        %v1193 = vadd.f32 %v1164, %v1192
        %v1194 = vpop.f32.mrf.mxu0
        %v1195 = vadd.f32 %v1166, %v1194
        %1196 = vmatmul.bf16.gmra.mxu0 %v485
        %v1197 = vpop.f32.mrf.mxu0
        %v1198 = vadd.f32 %v1169, %v1197
        %v1199 = vpop.f32.mrf.mxu0
        %v1200 = vadd.f32 %v1171, %v1199
        %1201 = vdwg.mxu0
        %1202 = vmatpush.bf16.msra.mxu0 %v980
        %1203 = vmatpush.bf16.msra.mxu0 %v976
        %1204 = vmatpush.bf16.msra.mxu0 %v972
        %1205 = vmatpush.bf16.msra.mxu0 %v968
        %1206 = vmatpush.bf16.msra.mxu0 %v964
        %1207 = vmatpush.bf16.msra.mxu0 %v960
        %1208 = vmatpush.bf16.msra.mxu0 %v956
        %1209 = vmatpush.bf16.msra.mxu0 %v952
        %1210 = vmatmul.bf16.gmra.mxu0 %v474
        %v1211 = vpop.f32.mrf.mxu0
        %v1212 = vadd.f32 %v1183, %v1211
        %v1213 = vpop.f32.mrf.mxu0
        %v1214 = vadd.f32 %v1185, %v1213
        %1215 = vmatmul.bf16.gmra.mxu0 %v478
        %v1216 = vpop.f32.mrf.mxu0
        %v1217 = vadd.f32 %v1188, %v1216
        %v1218 = vpop.f32.mrf.mxu0
        %v1219 = vadd.f32 %v1190, %v1218
        %1220 = vmatmul.bf16.gmra.mxu0 %v482
        %v1221 = vpop.f32.mrf.mxu0
        %v1222 = vadd.f32 %v1193, %v1221
        %v1223 = vpop.f32.mrf.mxu0
        %v1224 = vadd.f32 %v1195, %v1223
        %1225 = vmatmul.bf16.gmra.mxu0 %v486
        %v1226 = vpop.f32.mrf.mxu0
        %v1227 = vadd.f32 %v1198, %v1226
        %v1228 = vpop.f32.mrf.mxu0
        %v1229 = vadd.f32 %v1200, %v1228
        %1230 = vdwg.mxu0
        %1231 = vmatpush.bf16.msra.mxu0 %v1012
        %1232 = vmatpush.bf16.msra.mxu0 %v1008
        %1233 = vmatpush.bf16.msra.mxu0 %v1004
        %1234 = vmatpush.bf16.msra.mxu0 %v1000
        %1235 = vmatpush.bf16.msra.mxu0 %v996
        %1236 = vmatpush.bf16.msra.mxu0 %v992
        %1237 = vmatpush.bf16.msra.mxu0 %v988
        %1238 = vmatpush.bf16.msra.mxu0 %v984
        %1239 = vmatmul.bf16.gmra.mxu0 %v475
        %v1240 = vpop.f32.mrf.mxu0
        %v1241 = vadd.f32 %v1212, %v1240
        %v1242 = vpop.f32.mrf.mxu0
        %v1243 = vadd.f32 %v1214, %v1242
        %1244 = vmatmul.bf16.gmra.mxu0 %v479
        %v1245 = vpop.f32.mrf.mxu0
        %v1246 = vadd.f32 %v1217, %v1245
        %v1247 = vpop.f32.mrf.mxu0
        %v1248 = vadd.f32 %v1219, %v1247
        %1249 = vmatmul.bf16.gmra.mxu0 %v483
        %v1250 = vpop.f32.mrf.mxu0
        %v1251 = vadd.f32 %v1222, %v1250
        %v1252 = vpop.f32.mrf.mxu0
        %v1253 = vadd.f32 %v1224, %v1252
        %1254 = vmatmul.bf16.gmra.mxu0 %v487
        %v1255 = vpop.f32.mrf.mxu0
        %v1256 = vadd.f32 %v1227, %v1255
        %v1257 = vpop.f32.mrf.mxu0
        %v1258 = vadd.f32 %v1229, %v1257
        %1259 = vdwg.mxu0
        %1260 = vmatpush.bf16.msra.mxu0 %v917
        %1261 = vmatpush.bf16.msra.mxu0 %v913
        %1262 = vmatpush.bf16.msra.mxu0 %v909
        %1263 = vmatpush.bf16.msra.mxu0 %v905
        %1264 = vmatpush.bf16.msra.mxu0 %v901
        %1265 = vmatpush.bf16.msra.mxu0 %v897
        %1266 = vmatpush.bf16.msra.mxu0 %v893
        %1267 = vmatpush.bf16.msra.mxu0 %v889
        %1268 = vmatmul.bf16.gmra.mxu0 %v472
        %v1269 = vpop.f32.mrf.mxu0
        %v1270 = vadd.f32 %v417, %v1269
        %v1271 = vpop.f32.mrf.mxu0
        %v1272 = vadd.f32 %v417, %v1271
        %1273 = vmatmul.bf16.gmra.mxu0 %v476
        %v1274 = vpop.f32.mrf.mxu0
        %v1275 = vadd.f32 %v417, %v1274
        %v1276 = vpop.f32.mrf.mxu0
        %v1277 = vadd.f32 %v417, %v1276
        %1278 = vmatmul.bf16.gmra.mxu0 %v480
        %v1279 = vpop.f32.mrf.mxu0
        %v1280 = vadd.f32 %v417, %v1279
        %v1281 = vpop.f32.mrf.mxu0
        %v1282 = vadd.f32 %v417, %v1281
        %1283 = vmatmul.bf16.gmra.mxu0 %v484
        %v1284 = vpop.f32.mrf.mxu0
        %v1285 = vadd.f32 %v417, %v1284
        %v1286 = vpop.f32.mrf.mxu0
        %v1287 = vadd.f32 %v417, %v1286
        %1288 = vdwg.mxu0
        %1289 = vmatpush.bf16.msra.mxu0 %v949
        %1290 = vmatpush.bf16.msra.mxu0 %v945
        %1291 = vmatpush.bf16.msra.mxu0 %v941
        %1292 = vmatpush.bf16.msra.mxu0 %v937
        %1293 = vmatpush.bf16.msra.mxu0 %v933
        %1294 = vmatpush.bf16.msra.mxu0 %v929
        %1295 = vmatpush.bf16.msra.mxu0 %v925
        %1296 = vmatpush.bf16.msra.mxu0 %v921
        %1297 = vmatmul.bf16.gmra.mxu0 %v473
        %v1298 = vpop.f32.mrf.mxu0
        %v1299 = vadd.f32 %v1270, %v1298
        %v1300 = vpop.f32.mrf.mxu0
        %v1301 = vadd.f32 %v1272, %v1300
        %1302 = vmatmul.bf16.gmra.mxu0 %v477
        %v1303 = vpop.f32.mrf.mxu0
        %v1304 = vadd.f32 %v1275, %v1303
        %v1305 = vpop.f32.mrf.mxu0
        %v1306 = vadd.f32 %v1277, %v1305
        %1307 = vmatmul.bf16.gmra.mxu0 %v481
        %v1308 = vpop.f32.mrf.mxu0
        %v1309 = vadd.f32 %v1280, %v1308
        %v1310 = vpop.f32.mrf.mxu0
        %v1311 = vadd.f32 %v1282, %v1310
        %1312 = vmatmul.bf16.gmra.mxu0 %v485
        %v1313 = vpop.f32.mrf.mxu0
        %v1314 = vadd.f32 %v1285, %v1313
        %v1315 = vpop.f32.mrf.mxu0
        %v1316 = vadd.f32 %v1287, %v1315
        %1317 = vdwg.mxu0
        %1318 = vmatpush.bf16.msra.mxu0 %v981
        %1319 = vmatpush.bf16.msra.mxu0 %v977
        %1320 = vmatpush.bf16.msra.mxu0 %v973
        %1321 = vmatpush.bf16.msra.mxu0 %v969
        %1322 = vmatpush.bf16.msra.mxu0 %v965
        %1323 = vmatpush.bf16.msra.mxu0 %v961
        %1324 = vmatpush.bf16.msra.mxu0 %v957
        %1325 = vmatpush.bf16.msra.mxu0 %v953
        %1326 = vmatmul.bf16.gmra.mxu0 %v474
        %v1327 = vpop.f32.mrf.mxu0
        %v1328 = vadd.f32 %v1299, %v1327
        %v1329 = vpop.f32.mrf.mxu0
        %v1330 = vadd.f32 %v1301, %v1329
        %1331 = vmatmul.bf16.gmra.mxu0 %v478
        %v1332 = vpop.f32.mrf.mxu0
        %v1333 = vadd.f32 %v1304, %v1332
        %v1334 = vpop.f32.mrf.mxu0
        %v1335 = vadd.f32 %v1306, %v1334
        %1336 = vmatmul.bf16.gmra.mxu0 %v482
        %v1337 = vpop.f32.mrf.mxu0
        %v1338 = vadd.f32 %v1309, %v1337
        %v1339 = vpop.f32.mrf.mxu0
        %v1340 = vadd.f32 %v1311, %v1339
        %1341 = vmatmul.bf16.gmra.mxu0 %v486
        %v1342 = vpop.f32.mrf.mxu0
        %v1343 = vadd.f32 %v1314, %v1342
        %v1344 = vpop.f32.mrf.mxu0
        %v1345 = vadd.f32 %v1316, %v1344
        %1346 = vdwg.mxu0
        %1347 = vmatpush.bf16.msra.mxu0 %v1013
        %1348 = vmatpush.bf16.msra.mxu0 %v1009
        %1349 = vmatpush.bf16.msra.mxu0 %v1005
        %1350 = vmatpush.bf16.msra.mxu0 %v1001
        %1351 = vmatpush.bf16.msra.mxu0 %v997
        %1352 = vmatpush.bf16.msra.mxu0 %v993
        %1353 = vmatpush.bf16.msra.mxu0 %v989
        %1354 = vmatpush.bf16.msra.mxu0 %v985
        %1355 = vmatmul.bf16.gmra.mxu0 %v475
        %v1356 = vpop.f32.mrf.mxu0
        %v1357 = vadd.f32 %v1328, %v1356
        %v1358 = vpop.f32.mrf.mxu0
        %v1359 = vadd.f32 %v1330, %v1358
        %1360 = vmatmul.bf16.gmra.mxu0 %v479
        %v1361 = vpop.f32.mrf.mxu0
        %v1362 = vadd.f32 %v1333, %v1361
        %v1363 = vpop.f32.mrf.mxu0
        %v1364 = vadd.f32 %v1335, %v1363
        %1365 = vmatmul.bf16.gmra.mxu0 %v483
        %v1366 = vpop.f32.mrf.mxu0
        %v1367 = vadd.f32 %v1338, %v1366
        %v1368 = vpop.f32.mrf.mxu0
        %v1369 = vadd.f32 %v1340, %v1368
        %1370 = vmatmul.bf16.gmra.mxu0 %v487
        %v1371 = vpop.f32.mrf.mxu0
        %v1372 = vadd.f32 %v1343, %v1371
        %v1373 = vpop.f32.mrf.mxu0
        %v1374 = vadd.f32 %v1345, %v1373
        %1375 = vdwg.mxu0
        %1376 = vmatpush.bf16.msra.mxu0 %v918
        %1377 = vmatpush.bf16.msra.mxu0 %v914
        %1378 = vmatpush.bf16.msra.mxu0 %v910
        %1379 = vmatpush.bf16.msra.mxu0 %v906
        %1380 = vmatpush.bf16.msra.mxu0 %v902
        %1381 = vmatpush.bf16.msra.mxu0 %v898
        %1382 = vmatpush.bf16.msra.mxu0 %v894
        %1383 = vmatpush.bf16.msra.mxu0 %v890
        %1384 = vmatmul.bf16.gmra.mxu0 %v472
        %v1385 = vpop.f32.mrf.mxu0
        %v1386 = vadd.f32 %v418, %v1385
        %v1387 = vpop.f32.mrf.mxu0
        %v1388 = vadd.f32 %v418, %v1387
        %1389 = vmatmul.bf16.gmra.mxu0 %v476
        %v1390 = vpop.f32.mrf.mxu0
        %v1391 = vadd.f32 %v418, %v1390
        %v1392 = vpop.f32.mrf.mxu0
        %v1393 = vadd.f32 %v418, %v1392
        %1394 = vmatmul.bf16.gmra.mxu0 %v480
        %v1395 = vpop.f32.mrf.mxu0
        %v1396 = vadd.f32 %v418, %v1395
        %v1397 = vpop.f32.mrf.mxu0
        %v1398 = vadd.f32 %v418, %v1397
        %1399 = vmatmul.bf16.gmra.mxu0 %v484
        %v1400 = vpop.f32.mrf.mxu0
        %v1401 = vadd.f32 %v418, %v1400
        %v1402 = vpop.f32.mrf.mxu0
        %v1403 = vadd.f32 %v418, %v1402
        %1404 = vdwg.mxu0
        %1405 = vmatpush.bf16.msra.mxu0 %v950
        %1406 = vmatpush.bf16.msra.mxu0 %v946
        %1407 = vmatpush.bf16.msra.mxu0 %v942
        %1408 = vmatpush.bf16.msra.mxu0 %v938
        %1409 = vmatpush.bf16.msra.mxu0 %v934
        %1410 = vmatpush.bf16.msra.mxu0 %v930
        %1411 = vmatpush.bf16.msra.mxu0 %v926
        %1412 = vmatpush.bf16.msra.mxu0 %v922
        %1413 = vmatmul.bf16.gmra.mxu0 %v473
        %v1414 = vpop.f32.mrf.mxu0
        %v1415 = vadd.f32 %v1386, %v1414
        %v1416 = vpop.f32.mrf.mxu0
        %v1417 = vadd.f32 %v1388, %v1416
        %1418 = vmatmul.bf16.gmra.mxu0 %v477
        %v1419 = vpop.f32.mrf.mxu0
        %v1420 = vadd.f32 %v1391, %v1419
        %v1421 = vpop.f32.mrf.mxu0
        %v1422 = vadd.f32 %v1393, %v1421
        %1423 = vmatmul.bf16.gmra.mxu0 %v481
        %v1424 = vpop.f32.mrf.mxu0
        %v1425 = vadd.f32 %v1396, %v1424
        %v1426 = vpop.f32.mrf.mxu0
        %v1427 = vadd.f32 %v1398, %v1426
        %1428 = vmatmul.bf16.gmra.mxu0 %v485
        %v1429 = vpop.f32.mrf.mxu0
        %v1430 = vadd.f32 %v1401, %v1429
        %v1431 = vpop.f32.mrf.mxu0
        %v1432 = vadd.f32 %v1403, %v1431
        %1433 = vdwg.mxu0
        %1434 = vmatpush.bf16.msra.mxu0 %v982
        %1435 = vmatpush.bf16.msra.mxu0 %v978
        %1436 = vmatpush.bf16.msra.mxu0 %v974
        %1437 = vmatpush.bf16.msra.mxu0 %v970
        %1438 = vmatpush.bf16.msra.mxu0 %v966
        %1439 = vmatpush.bf16.msra.mxu0 %v962
        %1440 = vmatpush.bf16.msra.mxu0 %v958
        %1441 = vmatpush.bf16.msra.mxu0 %v954
        %1442 = vmatmul.bf16.gmra.mxu0 %v474
        %v1443 = vpop.f32.mrf.mxu0
        %v1444 = vadd.f32 %v1415, %v1443
        %v1445 = vpop.f32.mrf.mxu0
        %v1446 = vadd.f32 %v1417, %v1445
        %1447 = vmatmul.bf16.gmra.mxu0 %v478
        %v1448 = vpop.f32.mrf.mxu0
        %v1449 = vadd.f32 %v1420, %v1448
        %v1450 = vpop.f32.mrf.mxu0
        %v1451 = vadd.f32 %v1422, %v1450
        %1452 = vmatmul.bf16.gmra.mxu0 %v482
        %v1453 = vpop.f32.mrf.mxu0
        %v1454 = vadd.f32 %v1425, %v1453
        %v1455 = vpop.f32.mrf.mxu0
        %v1456 = vadd.f32 %v1427, %v1455
        %1457 = vmatmul.bf16.gmra.mxu0 %v486
        %v1458 = vpop.f32.mrf.mxu0
        %v1459 = vadd.f32 %v1430, %v1458
        %v1460 = vpop.f32.mrf.mxu0
        %v1461 = vadd.f32 %v1432, %v1460
        %1462 = vdwg.mxu0
        %1463 = vmatpush.bf16.msra.mxu0 %v1014
        %1464 = vmatpush.bf16.msra.mxu0 %v1010
        %1465 = vmatpush.bf16.msra.mxu0 %v1006
        %1466 = vmatpush.bf16.msra.mxu0 %v1002
        %1467 = vmatpush.bf16.msra.mxu0 %v998
        %1468 = vmatpush.bf16.msra.mxu0 %v994
        %1469 = vmatpush.bf16.msra.mxu0 %v990
        %1470 = vmatpush.bf16.msra.mxu0 %v986
        %1471 = vmatmul.bf16.gmra.mxu0 %v475
        %v1472 = vpop.f32.mrf.mxu0
        %v1473 = vadd.f32 %v1444, %v1472
        %v1474 = vpop.f32.mrf.mxu0
        %v1475 = vadd.f32 %v1446, %v1474
        %1476 = vmatmul.bf16.gmra.mxu0 %v479
        %v1477 = vpop.f32.mrf.mxu0
        %v1478 = vadd.f32 %v1449, %v1477
        %v1479 = vpop.f32.mrf.mxu0
        %v1480 = vadd.f32 %v1451, %v1479
        %1481 = vmatmul.bf16.gmra.mxu0 %v483
        %v1482 = vpop.f32.mrf.mxu0
        %v1483 = vadd.f32 %v1454, %v1482
        %v1484 = vpop.f32.mrf.mxu0
        %v1485 = vadd.f32 %v1456, %v1484
        %1486 = vmatmul.bf16.gmra.mxu0 %v487
        %v1487 = vpop.f32.mrf.mxu0
        %v1488 = vadd.f32 %v1459, %v1487
        %v1489 = vpop.f32.mrf.mxu0
        %v1490 = vadd.f32 %v1461, %v1489
        %1491 = vdwg.mxu0
        %1492 = vmatpush.bf16.msra.mxu0 %v919
        %1493 = vmatpush.bf16.msra.mxu0 %v915
        %1494 = vmatpush.bf16.msra.mxu0 %v911
        %1495 = vmatpush.bf16.msra.mxu0 %v907
        %1496 = vmatpush.bf16.msra.mxu0 %v903
        %1497 = vmatpush.bf16.msra.mxu0 %v899
        %1498 = vmatpush.bf16.msra.mxu0 %v895
        %1499 = vmatpush.bf16.msra.mxu0 %v891
        %1500 = vmatmul.bf16.gmra.mxu0 %v472
        %v1501 = vpop.f32.mrf.mxu0
        %v1502 = vadd.f32 %v419, %v1501
        %v1503 = vpop.f32.mrf.mxu0
        %v1504 = vadd.f32 %v419, %v1503
        %1505 = vmatmul.bf16.gmra.mxu0 %v476
        %v1506 = vpop.f32.mrf.mxu0
        %v1507 = vadd.f32 %v419, %v1506
        %v1508 = vpop.f32.mrf.mxu0
        %v1509 = vadd.f32 %v419, %v1508
        %1510 = vmatmul.bf16.gmra.mxu0 %v480
        %v1511 = vpop.f32.mrf.mxu0
        %v1512 = vadd.f32 %v419, %v1511
        %v1513 = vpop.f32.mrf.mxu0
        %v1514 = vadd.f32 %v419, %v1513
        %1515 = vmatmul.bf16.gmra.mxu0 %v484
        %v1516 = vpop.f32.mrf.mxu0
        %v1517 = vadd.f32 %v419, %v1516
        %v1518 = vpop.f32.mrf.mxu0
        %v1519 = vadd.f32 %v419, %v1518
        %1520 = vdwg.mxu0
        %1521 = vmatpush.bf16.msra.mxu0 %v951
        %1522 = vmatpush.bf16.msra.mxu0 %v947
        %1523 = vmatpush.bf16.msra.mxu0 %v943
        %1524 = vmatpush.bf16.msra.mxu0 %v939
        %1525 = vmatpush.bf16.msra.mxu0 %v935
        %1526 = vmatpush.bf16.msra.mxu0 %v931
        %1527 = vmatpush.bf16.msra.mxu0 %v927
        %1528 = vmatpush.bf16.msra.mxu0 %v923
        %1529 = vmatmul.bf16.gmra.mxu0 %v473
        %v1530 = vpop.f32.mrf.mxu0
        %v1531 = vadd.f32 %v1502, %v1530
        %v1532 = vpop.f32.mrf.mxu0
        %v1533 = vadd.f32 %v1504, %v1532
        %1534 = vmatmul.bf16.gmra.mxu0 %v477
        %v1535 = vpop.f32.mrf.mxu0
        %v1536 = vadd.f32 %v1507, %v1535
        %v1537 = vpop.f32.mrf.mxu0
        %v1538 = vadd.f32 %v1509, %v1537
        %1539 = vmatmul.bf16.gmra.mxu0 %v481
        %v1540 = vpop.f32.mrf.mxu0
        %v1541 = vadd.f32 %v1512, %v1540
        %v1542 = vpop.f32.mrf.mxu0
        %v1543 = vadd.f32 %v1514, %v1542
        %1544 = vmatmul.bf16.gmra.mxu0 %v485
        %v1545 = vpop.f32.mrf.mxu0
        %v1546 = vadd.f32 %v1517, %v1545
        %v1547 = vpop.f32.mrf.mxu0
        %v1548 = vadd.f32 %v1519, %v1547
        %1549 = vdwg.mxu0
        %1550 = vmatpush.bf16.msra.mxu0 %v983
        %1551 = vmatpush.bf16.msra.mxu0 %v979
        %1552 = vmatpush.bf16.msra.mxu0 %v975
        %1553 = vmatpush.bf16.msra.mxu0 %v971
        %1554 = vmatpush.bf16.msra.mxu0 %v967
        %1555 = vmatpush.bf16.msra.mxu0 %v963
        %1556 = vmatpush.bf16.msra.mxu0 %v959
        %1557 = vmatpush.bf16.msra.mxu0 %v955
        %1558 = vmatmul.bf16.gmra.mxu0 %v474
        %v1559 = vpop.f32.mrf.mxu0
        %v1560 = vadd.f32 %v1531, %v1559
        %v1561 = vpop.f32.mrf.mxu0
        %v1562 = vadd.f32 %v1533, %v1561
        %1563 = vmatmul.bf16.gmra.mxu0 %v478
        %v1564 = vpop.f32.mrf.mxu0
        %v1565 = vadd.f32 %v1536, %v1564
        %v1566 = vpop.f32.mrf.mxu0
        %v1567 = vadd.f32 %v1538, %v1566
        %1568 = vmatmul.bf16.gmra.mxu0 %v482
        %v1569 = vpop.f32.mrf.mxu0
        %v1570 = vadd.f32 %v1541, %v1569
        %v1571 = vpop.f32.mrf.mxu0
        %v1572 = vadd.f32 %v1543, %v1571
        %1573 = vmatmul.bf16.gmra.mxu0 %v486
        %v1574 = vpop.f32.mrf.mxu0
        %v1575 = vadd.f32 %v1546, %v1574
        %v1576 = vpop.f32.mrf.mxu0
        %v1577 = vadd.f32 %v1548, %v1576
        %1578 = vdwg.mxu0
        %1579 = vmatpush.bf16.msra.mxu0 %v1015
        %1580 = vmatpush.bf16.msra.mxu0 %v1011
        %1581 = vmatpush.bf16.msra.mxu0 %v1007
        %1582 = vmatpush.bf16.msra.mxu0 %v1003
        %1583 = vmatpush.bf16.msra.mxu0 %v999
        %1584 = vmatpush.bf16.msra.mxu0 %v995
        %1585 = vmatpush.bf16.msra.mxu0 %v991
        %1586 = vmatpush.bf16.msra.mxu0 %v987
        %1587 = vmatmul.bf16.gmra.mxu0 %v475
        %v1588 = vpop.f32.mrf.mxu0
        %v1589 = vadd.f32 %v1560, %v1588
        %v1590 = vpop.f32.mrf.mxu0
        %v1591 = vadd.f32 %v1562, %v1590
        %1592 = vmatmul.bf16.gmra.mxu0 %v479
        %v1593 = vpop.f32.mrf.mxu0
        %v1594 = vadd.f32 %v1565, %v1593
        %v1595 = vpop.f32.mrf.mxu0
        %v1596 = vadd.f32 %v1567, %v1595
        %1597 = vmatmul.bf16.gmra.mxu0 %v483
        %v1598 = vpop.f32.mrf.mxu0
        %v1599 = vadd.f32 %v1570, %v1598
        %v1600 = vpop.f32.mrf.mxu0
        %v1601 = vadd.f32 %v1572, %v1600
        %1602 = vmatmul.bf16.gmra.mxu0 %v487
        %v1603 = vpop.f32.mrf.mxu0
        %v1604 = vadd.f32 %v1575, %v1603
        %v1605 = vpop.f32.mrf.mxu0
        %v1606 = vadd.f32 %v1577, %v1605
        %1607 = vdwg.mxu0
        %v1608 = vpack.c.bf16 %v1357, %v1241
        %v1609 = vpack.c.bf16 %v1589, %v1473
        %v1610 = vpack.c.bf16 %v1359, %v1243
        %v1611 = vpack.c.bf16 %v1591, %v1475
        %v1612 = vpack.c.bf16 %v1362, %v1246
        %v1613 = vpack.c.bf16 %v1594, %v1478
        %v1614 = vpack.c.bf16 %v1364, %v1248
        %v1615 = vpack.c.bf16 %v1596, %v1480
        %v1616 = vpack.c.bf16 %v1367, %v1251
        %v1617 = vpack.c.bf16 %v1599, %v1483
        %v1618 = vpack.c.bf16 %v1369, %v1253
        %v1619 = vpack.c.bf16 %v1601, %v1485
        %v1620 = vpack.c.bf16 %v1372, %v1256
        %v1621 = vpack.c.bf16 %v1604, %v1488
        %v1622 = vpack.c.bf16 %v1374, %v1258
        %v1623 = vpack.c.bf16 %v1606, %v1490
        %1624 = vst [vmem:[%s264] sm:$0xff] %v1608
        %1625 = vst [vmem:[%s264 + $0x8] sm:$0xff] %v1609
        %1626 = vst [vmem:[%s264 + $0x10] sm:$0xff] %v1610
        %1627 = vst [vmem:[%s264 + $0x18] sm:$0xff] %v1611
        %1628 = vst [vmem:[%s264 + $0x20] sm:$0xff] %v1612
        %1629 = vst [vmem:[%s264 + $0x28] sm:$0xff] %v1613
        %1630 = vst [vmem:[%s264 + $0x30] sm:$0xff] %v1614
        %1631 = vst [vmem:[%s264 + $0x38] sm:$0xff] %v1615
        %1632 = vst [vmem:[%s264 + $0x40] sm:$0xff] %v1616
        %1633 = vst [vmem:[%s264 + $0x48] sm:$0xff] %v1617
        %1634 = vst [vmem:[%s264 + $0x50] sm:$0xff] %v1618
        %1635 = vst [vmem:[%s264 + $0x58] sm:$0xff] %v1619
        %1636 = vst [vmem:[%s264 + $0x60] sm:$0xff] %v1620
        %1637 = vst [vmem:[%s264 + $0x68] sm:$0xff] %v1621
        %1638 = vst [vmem:[%s264 + $0x70] sm:$0xff] %v1622
        %1639 = vst [vmem:[%s264 + $0x78] sm:$0xff] %v1623
        %s1640 = sand.u32 %s132, 1
        %s1641 = scalar_lea.sflag [#allocation4], %s1640
        %s1642 = sand.u32 %s132, 1
        %s1643 = smul.addr %s1642, 128
        %s1644 = scalar_lea.vmem [#allocation8], %s1643
        // Predicated region
        $region45: #{tpu_custom_call.1} parent=31 // pred_check
          %p1645 = pneg %p142
        $region46: #{tpu_custom_call.1} parent=31 // pred_check_branch
          %1647 = sbr.rel (%p1645) target = $region48
        $region47: #{tpu_custom_call.1} parent=31 // pred_region
          %s1648 = smul.u32 8, %s28
          %s1649 = smul.u32 4, %s26
          %1651 = vsyncadd %s1641, 0
          %s1652 = smul.addr %s1648, 4
          %s1653 = sadd.s32 %s1649, %s1652
          %s1654 = smul.addr %s27, 32
          %s1655 = sadd.s32 %s1653, %s1654
          %s1656 = smul.addr %s1655, 4
          %s1657 = scalar_lea.hbm %s3, %s1656
          %s1658 = sshll.u32 %s1644, 4
          %s1659 = int_to_ptr.vmem [resolvable:$true] %s1658
          %s1660 = sshll.u32 %s1657, 4
          %s1661 = int_to_ptr.hbm [resolvable:$true] %s1660
          %1666 = dma.vmem_to_hbm [thread:$0]  %s1659, 2048, %s1661, %s1641, 256, 256, 16
        $region48: #{tpu_custom_call.1} parent=31 // pred_fallthru
          _
      $region32: #{tpu_custom_call.1} parent=5 // pred_fallthru
        _
      %p1667 = scmp.le.s32.totalorder 2, %s16
      // Predicated region
      $region49: #{tpu_custom_call.1} parent=5 // pred_check
        %p1668 = pneg %p1667
      $region50: #{tpu_custom_call.1} parent=5 // pred_check_branch
        %1670 = sbr.rel (%p1668) target = $region52
      $region51: #{tpu_custom_call.1} parent=5 // pred_region
        %s1671 = ssub.s32 %s16, 2
        // Predicated region
        $region53: #{tpu_custom_call.1} parent=51 // pred_check
          %p1672 = pneg %p148
        $region54: #{tpu_custom_call.1} parent=51 // pred_check_branch
          %1674 = sbr.rel (%p1672) target = $region56
        $region55: #{tpu_custom_call.1} parent=51 // pred_region
          %s1675 = sand.u32 %s133, 1
          %s1676 = scalar_lea.sflag [#allocation4], %s1675
          %s1677 = sand.u32 %s133, 1
          %s1678 = smul.addr %s1677, 128
          %s1679 = scalar_lea.vmem [#allocation8], %s1678
          %1681 = dma.done %s1676, 2048
        $region56: #{tpu_custom_call.1} parent=51 // pred_fallthru
          _
      $region52: #{tpu_custom_call.1} parent=5 // pred_fallthru
        _
    $region6: #{tpu_custom_call.1} parent=1 // loop_footer
      %s20 = sadd.s32 1, %s16
    $region7: #{tpu_custom_call.1} parent=1 // loop_footer_branch
      %15 = sbr.rel target = $region3
    $region8: #{tpu_custom_call.1} parent=1 // loop_exit
      _
    %1682 = vsyncpa [#allocation3], 1
    %s1683 = scalar_lea.sflag [#allocation3], 1
    %1684 = vsyncpa %s1683, 1
    %1685 = vsyncpa [#allocation6], 1
    %1686 = vsyncpa [#allocation4], 1
    %s1687 = scalar_lea.sflag [#allocation4], 1
    %1688 = vsyncpa %s1687, 1

</llo_original>
